<compile_context>
chip_gen: v5e
topology: v5e:2x2
jax: 0.10.0
libtpu: 0.0.40
codegen_flags: <defaults>
</compile_context>

<pallas_src>
import functools
import math

import jax
import jax.numpy as jnp
import numpy as np
from jax.experimental import pallas as pl
from jax.experimental.pallas import tpu as pltpu


# -----------------------------------------------------------------------------
# Pallas kernel: all layers, whole batch.  Grid axis 0 = layer (sequential).
# -----------------------------------------------------------------------------
def _model_kernel(x_ref, pos_ref, mask_ref,
                  ln1_w_ref, ln1_b_ref,
                  w_qkv_ref, b_qkv_ref,
                  wo_ref, bo_ref,
                  ln2_w_ref, ln2_b_ref,
                  w1_ref, b1_ref,
                  w2_ref, b2_ref,
                  out_ref,
                  act_ref,
                  *, num_heads: int, dk: int, use_pos: bool):
    layer = pl.program_id(0)
    B, S, F = out_ref.shape
    eps = jnp.float32(1e-5)

    # ----- first layer: load input, add positional embedding, flatten -----
    @pl.when(layer == 0)
    def _init():
        x0 = x_ref[...]                                  # (B, S, F)
        if use_pos:
            x0 = x0 + pos_ref[...][None]                 # (S, F) broadcast
        act_ref[...] = x0.reshape(B * S, F)

    h = act_ref[...]                                     # (B*S, F)

    def layer_norm(v, w_ref, b_ref):
        m = jnp.mean(v, axis=-1, keepdims=True)
        var = jnp.mean((v - m) ** 2, axis=-1, keepdims=True)
        return (v - m) * jax.lax.rsqrt(var + eps) * w_ref[0] + b_ref[0]

    # ----- PreLN self-attention, fused QKV projection for all heads -----
    xn = layer_norm(h, ln1_w_ref, ln1_b_ref)             # (B*S, F)
    proj = (jnp.dot(xn, w_qkv_ref[0], preferred_element_type=jnp.float32)
            + b_qkv_ref[0])                              # (B*S, 3*H*dk)
    proj = proj.reshape(B, S, 3 * num_heads * dk)

    mask = mask_ref[...]                                 # (S, S), additive
    inv_sqrt_dk = jnp.float32(1.0 / math.sqrt(dk))

    attn = jnp.zeros((B * S, F), jnp.float32)
    for hd in range(num_heads):
        q = proj[:, :, hd * dk:(hd + 1) * dk]                            # (B,S,dk)
        k = proj[:, :, (num_heads + hd) * dk:(num_heads + hd + 1) * dk]
        v = proj[:, :, (2 * num_heads + hd) * dk:(2 * num_heads + hd + 1) * dk]
        s = (jnp.einsum('bqd,bkd->bqk', q, k,
                        preferred_element_type=jnp.float32) * inv_sqrt_dk
             + mask)                                                     # (B,S,S)
        m = jnp.max(s, axis=-1, keepdims=True)
        e = jnp.exp(s - m)
        p = e * pl.reciprocal(jnp.sum(e, axis=-1, keepdims=True), approx=True)
        zh = jnp.einsum('bqk,bkd->bqd', p, v,
                        preferred_element_type=jnp.float32)              # (B,S,dk)
        # fold the output projection per head (no concat over heads)
        attn = attn + jnp.dot(zh.reshape(B * S, dk), wo_ref[0, hd],
                              preferred_element_type=jnp.float32)        # (B*S,F)
    attn = attn + bo_ref[0]

    # ----- PreLN FFN (dropout == identity) -----
    zres = h + attn
    zn = layer_norm(zres, ln2_w_ref, ln2_b_ref)
    hdn = jnp.maximum(
        jnp.dot(zn, w1_ref[0], preferred_element_type=jnp.float32) + b1_ref[0],
        jnp.float32(0.0))
    ffn = jnp.dot(hdn, w2_ref[0], preferred_element_type=jnp.float32) + b2_ref[0]
    new_h = zres + ffn
    act_ref[...] = new_h

    # ----- last layer: single HBM writeback of the output block -----
    @pl.when(layer == pl.num_programs(0) - 1)
    def _finalize():
        out_ref[...] = new_h.reshape(B, S, F)


# -----------------------------------------------------------------------------
# Wrapper: fuses per-head params, precomputes the mask, launches one kernel.
# -----------------------------------------------------------------------------
def _make_mask(S, max_items):
    mask = np.zeros((S, S), np.float32)
    mask[:-(max_items + 1), -(max_items + 1):] = -999999999.0
    for j in range(max_items):
        mask[-(max_items + 1 - j), -(max_items + 1 - j):] = -999999999.0
    return jnp.asarray(mask)


def _fuse_params(params):
    layers = params["layers"]
    L = len(layers)
    H, F, dk = layers[0]["wq"].shape

    def stack(name):
        return jnp.stack([lp[name] for lp in layers], axis=0)

    def flat(w):                                      # (L,H,F,dk) -> (L,F,H*dk)
        return jnp.transpose(w, (0, 2, 1, 3)).reshape(L, F, H * dk)

    w_qkv = jnp.concatenate(
        [flat(stack("wq")), flat(stack("wk")), flat(stack("wv"))], axis=-1)
    b_qkv = jnp.concatenate(
        [stack("bq").reshape(L, 1, H * dk),
         stack("bk").reshape(L, 1, H * dk),
         stack("bv").reshape(L, 1, H * dk)], axis=-1)

    return {
        "ln1_w": stack("ln1_w").reshape(L, 1, F),
        "ln1_b": stack("ln1_b").reshape(L, 1, F),
        "w_qkv": w_qkv,                               # (L, F, 3*H*dk)
        "b_qkv": b_qkv,                               # (L, 1, 3*H*dk)
        "wo": stack("wo").reshape(L, H, dk, F),       # per-head slices of WO
        "bo": stack("bo").reshape(L, 1, F),
        "ln2_w": stack("ln2_w").reshape(L, 1, F),
        "ln2_b": stack("ln2_b").reshape(L, 1, F),
        "w1": stack("w1"),                            # (L, F, 4F)
        "b1": stack("b1").reshape(L, 1, 4 * F),
        "w2": stack("w2"),                            # (L, 4F, F)
        "b2": stack("b2").reshape(L, 1, F),
    }


def text_preln_transformer(x, params, *, max_items, use_pos=True):
    B, S, F = x.shape
    fused = _fuse_params(params)
    L, H, dk, _ = fused["wo"].shape
    mask = _make_mask(S, max_items)

    weight_names = ["ln1_w", "ln1_b", "w_qkv", "b_qkv", "wo", "bo",
                    "ln2_w", "ln2_b", "w1", "b1", "w2", "b2"]
    weight_args = [fused[n] for n in weight_names]

    def layer_spec(arr):
        nd = arr.ndim
        return pl.BlockSpec((1,) + arr.shape[1:],
                            lambda l, _nd=nd: (l,) + (0,) * (_nd - 1))

    in_specs = (
        [pl.BlockSpec((B, S, F), lambda l: (0, 0, 0)),   # x: resident across layers
         pl.BlockSpec((S, F), lambda l: (0, 0)),         # pos_emb
         pl.BlockSpec((S, S), lambda l: (0, 0))]         # additive mask
        + [layer_spec(a) for a in weight_args])
    out_specs = pl.BlockSpec((B, S, F), lambda l: (0, 0, 0))

    kernel = functools.partial(_model_kernel, num_heads=H, dk=dk,
                               use_pos=use_pos)
    return pl.pallas_call(
        kernel,
        grid=(L,),
        in_specs=in_specs,
        out_specs=out_specs,
        out_shape=jax.ShapeDtypeStruct((B, S, F), jnp.float32),
        scratch_shapes=[pltpu.VMEM((B * S, F), jnp.float32)],
        compiler_params=pltpu.CompilerParams(
            dimension_semantics=("arbitrary",)),
    )(x, params["pos_emb"], mask, *weight_args)


# -----------------------------------------------------------------------------
# Deterministic parameter construction (per-head layout, like the PyTorch spec)
# -----------------------------------------------------------------------------
def make_pos_emb(seq_max_len, feature_size):
    pos_emb = [[np.sin(pos / 10000 ** (2 * i / feature_size)) if i % 2 == 0
                else np.cos(pos / 10000 ** (2 * i / feature_size))
                for i in range(feature_size)] for pos in range(seq_max_len)]
    return jnp.asarray(np.array(pos_emb, dtype=np.float32))


def make_params(key, layers_num, feature_size, dk, multi_num, seq_max_len):
    params = {"pos_emb": make_pos_emb(seq_max_len, feature_size), "layers": []}
    scale = 0.05
    for _ in range(layers_num):
        keys = jax.random.split(key, 11)
        key = keys[0]
        lp = {
            "ln1_w": jnp.ones((feature_size,), jnp.float32),
            "ln1_b": jnp.zeros((feature_size,), jnp.float32),
            "wq": scale * jax.random.normal(keys[1], (multi_num, feature_size, dk), jnp.float32),
            "bq": scale * jax.random.normal(keys[2], (multi_num, dk), jnp.float32),
            "wk": scale * jax.random.normal(keys[3], (multi_num, feature_size, dk), jnp.float32),
            "bk": scale * jax.random.normal(keys[4], (multi_num, dk), jnp.float32),
            "wv": scale * jax.random.normal(keys[5], (multi_num, feature_size, dk), jnp.float32),
            "bv": scale * jax.random.normal(keys[6], (multi_num, dk), jnp.float32),
            "wo": scale * jax.random.normal(keys[7], (multi_num * dk, feature_size), jnp.float32),
            "bo": jnp.zeros((feature_size,), jnp.float32),
            "ln2_w": jnp.ones((feature_size,), jnp.float32),
            "ln2_b": jnp.zeros((feature_size,), jnp.float32),
            "w1": scale * jax.random.normal(keys[8], (feature_size, 4 * feature_size), jnp.float32),
            "b1": scale * jax.random.normal(keys[9], (4 * feature_size,), jnp.float32),
            "w2": scale * jax.random.normal(keys[10], (4 * feature_size, feature_size), jnp.float32),
            "b2": jnp.zeros((feature_size,), jnp.float32),
        }
        params["layers"].append(lp)
    return params


# -----------------------------------------------------------------------------
# Pure-JAX reference (same math as the PyTorch module, per-head params).
# -----------------------------------------------------------------------------
def _ref_forward(x, params, *, max_items, use_pos=True):
    if use_pos:
        x = x + params["pos_emb"]
    S = x.shape[1]
    mask = _make_mask(S, max_items)

    def ln(v, w, b):
        m = jnp.mean(v, -1, keepdims=True)
        var = jnp.mean((v - m) ** 2, -1, keepdims=True)
        return (v - m) / jnp.sqrt(var + 1e-5) * w + b

    for lp in params["layers"]:
        H, _, dk = lp["wq"].shape
        xn = ln(x, lp["ln1_w"], lp["ln1_b"])
        heads = []
        for h in range(H):
            q = xn @ lp["wq"][h] + lp["bq"][h]
            k = xn @ lp["wk"][h] + lp["bk"][h]
            v = xn @ lp["wv"][h] + lp["bv"][h]
            s = jnp.einsum("bqd,bkd->bqk", q, k) / np.sqrt(dk) + mask
            p = jax.nn.softmax(s, axis=-1)
            heads.append(jnp.einsum("bqk,bkd->bqd", p, v))
        z = jnp.concatenate(heads, axis=-1) @ lp["wo"] + lp["bo"]
        zres = x + z
        zn = ln(zres, lp["ln2_w"], lp["ln2_b"])
        hdn = jnp.maximum(zn @ lp["w1"] + lp["b1"], 0.0)
        x = zres + hdn @ lp["w2"] + lp["b2"]
    return x


if __name__ == "__main__":
    B = 2               # batch
    seqMaxLen = 16      # S
    featureSize = 32    # F
    dk = 8
    multiNum = 2
    layersNum = 2
    maxItems = 4

    key = jax.random.PRNGKey(0)
    kx, kp = jax.random.split(key)
    x = jax.random.normal(kx, (B, seqMaxLen, featureSize), jnp.float32)
    params = make_params(kp, layersNum, featureSize, dk, multiNum, seqMaxLen)

    out = text_preln_transformer(x, params, max_items=maxItems, use_pos=True)
    out = jax.block_until_ready(out)

    ref = _ref_forward(x, params, max_items=maxItems, use_pos=True)
    ref = jax.block_until_ready(ref)

    assert out.shape == (B, seqMaxLen, featureSize)
    # tolerance slightly loosened vs exact-divide reference because the kernel
    # uses the EUP approximate reciprocal in the softmax denominator.
    np.testing.assert_allclose(np.asarray(out), np.asarray(ref),
                               rtol=2e-3, atol=2e-3)
    print("KERNEL_OK")
</pallas_src>

<mosaic_0001>
module attributes {stable_mosaic.version = 11 : i64} {
  func.func @_model_kernel(%arg0: i32, %arg1: memref<2x16x32xf32, #tpu.memory_space<vmem>>, %arg2: memref<16x32xf32, #tpu.memory_space<vmem>>, %arg3: memref<16x16xf32, #tpu.memory_space<vmem>>, %arg4: memref<1x1x32xf32, #tpu.memory_space<vmem>>, %arg5: memref<1x1x32xf32, #tpu.memory_space<vmem>>, %arg6: memref<1x32x48xf32, #tpu.memory_space<vmem>>, %arg7: memref<1x1x48xf32, #tpu.memory_space<vmem>>, %arg8: memref<1x2x8x32xf32, #tpu.memory_space<vmem>>, %arg9: memref<1x1x32xf32, #tpu.memory_space<vmem>>, %arg10: memref<1x1x32xf32, #tpu.memory_space<vmem>>, %arg11: memref<1x1x32xf32, #tpu.memory_space<vmem>>, %arg12: memref<1x32x128xf32, #tpu.memory_space<vmem>>, %arg13: memref<1x1x128xf32, #tpu.memory_space<vmem>>, %arg14: memref<1x128x32xf32, #tpu.memory_space<vmem>>, %arg15: memref<1x1x32xf32, #tpu.memory_space<vmem>>, %arg16: memref<2x16x32xf32, #tpu.memory_space<vmem>>, %arg17: memref<32x32xf32, #tpu.memory_space<vmem>>) attributes {dimension_semantics = [#tpu.dimension_semantics<arbitrary>], iteration_bounds = array<i64: 2>, scalar_prefetch = 0 : i64, scratch_operands = 1 : i64, tpu.core_type = #tpu.core_type<tc>, window_params = [{pipeline_mode = #tpu.pipeline_mode<synchronous>, transform_indices = @transform_0, window_bounds = array<i64: 2, 16, 32>}, {pipeline_mode = #tpu.pipeline_mode<synchronous>, transform_indices = @transform_1, window_bounds = array<i64: 16, 32>}, {pipeline_mode = #tpu.pipeline_mode<synchronous>, transform_indices = @transform_2, window_bounds = array<i64: 16, 16>}, {transform_indices = @transform_3, window_bounds = array<i64: 1, 1, 32>}, {transform_indices = @transform_4, window_bounds = array<i64: 1, 1, 32>}, {transform_indices = @transform_5, window_bounds = array<i64: 1, 32, 48>}, {transform_indices = @transform_6, window_bounds = array<i64: 1, 1, 48>}, {transform_indices = @transform_7, window_bounds = array<i64: 1, 2, 8, 32>}, {transform_indices = @transform_8, window_bounds = array<i64: 1, 1, 32>}, {transform_indices = @transform_9, window_bounds = array<i64: 1, 1, 32>}, {transform_indices = @transform_10, window_bounds = array<i64: 1, 1, 32>}, {transform_indices = @transform_11, window_bounds = array<i64: 1, 32, 128>}, {transform_indices = @transform_12, window_bounds = array<i64: 1, 1, 128>}, {transform_indices = @transform_13, window_bounds = array<i64: 1, 128, 32>}, {transform_indices = @transform_14, window_bounds = array<i64: 1, 1, 32>}, {pipeline_mode = #tpu.pipeline_mode<synchronous>, transform_indices = @transform_15, window_bounds = array<i64: 2, 16, 32>}]} {
    %c0_i32 = arith.constant 0 : i32
    %0 = arith.cmpi eq, %arg0, %c0_i32 : i32
    %1 = arith.extui %0 : i1 to i32
    %c0_i32_0 = arith.constant 0 : i32
    %2 = arith.cmpi ne, %1, %c0_i32_0 : i32
    scf.if %2 {
      %c0_73 = arith.constant 0 : index
      %c0_74 = arith.constant 0 : index
      %c0_75 = arith.constant 0 : index
      %142 = vector.load %arg1[%c0_73, %c0_74, %c0_75] : memref<2x16x32xf32, #tpu.memory_space<vmem>>, vector<2x16x32xf32>
      %c0_76 = arith.constant 0 : index
      %c0_77 = arith.constant 0 : index
      %143 = vector.load %arg2[%c0_76, %c0_77] : memref<16x32xf32, #tpu.memory_space<vmem>>, vector<16x32xf32>
      %144 = vector.shape_cast %143 : vector<16x32xf32> to vector<1x16x32xf32>
      %145 = vector.broadcast %144 : vector<1x16x32xf32> to vector<2x16x32xf32>
      %146 = arith.addf %142, %145 : vector<2x16x32xf32>
      %147 = vector.shape_cast %146 : vector<2x16x32xf32> to vector<32x32xf32>
      %c0_78 = arith.constant 0 : index
      %c0_79 = arith.constant 0 : index
      %148 = vector.load %arg17[%c0_78, %c0_79] : memref<32x32xf32, #tpu.memory_space<vmem>>, vector<32x32xf32>
      tpu.vector_store %arg17[%c0_78, %c0_79], %147 {strides = array<i32>} : memref<32x32xf32, #tpu.memory_space<vmem>>, vector<32x32xf32>,
    } else {
    }
    %c0 = arith.constant 0 : index
    %c0_1 = arith.constant 0 : index
    %3 = vector.load %arg17[%c0, %c0_1] : memref<32x32xf32, #tpu.memory_space<vmem>>, vector<32x32xf32>
    %cst = arith.constant dense<0.000000e+00> : vector<32xf32>
    %4 = vector.multi_reduction <add>, %3, %cst [1] : vector<32x32xf32> to vector<32xf32>
    %5 = vector.shape_cast %4 : vector<32xf32> to vector<32x1xf32>
    %cst_2 = arith.constant 3.200000e+01 : f32
    %6 = vector.broadcast %cst_2 : f32 to vector<32x1xf32>
    %7 = arith.divf %5, %6 : vector<32x1xf32>
    %8 = vector.broadcast %7 : vector<32x1xf32> to vector<32x32xf32>
    %9 = arith.subf %3, %8 : vector<32x32xf32>
    %10 = arith.mulf %9, %9 : vector<32x32xf32>
    %cst_3 = arith.constant dense<0.000000e+00> : vector<32xf32>
    %11 = vector.multi_reduction <add>, %10, %cst_3 [1] : vector<32x32xf32> to vector<32xf32>
    %12 = vector.shape_cast %11 : vector<32xf32> to vector<32x1xf32>
    %cst_4 = arith.constant 3.200000e+01 : f32
    %13 = vector.broadcast %cst_4 : f32 to vector<32x1xf32>
    %14 = arith.divf %12, %13 : vector<32x1xf32>
    %15 = vector.broadcast %7 : vector<32x1xf32> to vector<32x32xf32>
    %16 = arith.subf %3, %15 : vector<32x32xf32>
    %cst_5 = arith.constant 9.99999974E-6 : f32
    %17 = vector.broadcast %cst_5 : f32 to vector<32x1xf32>
    %18 = arith.addf %14, %17 : vector<32x1xf32>
    %19 = math.rsqrt %18 : vector<32x1xf32>
    %20 = vector.broadcast %19 : vector<32x1xf32> to vector<32x32xf32>
    %21 = arith.mulf %16, %20 : vector<32x32xf32>
    %c0_6 = arith.constant 0 : index
    %c0_7 = arith.constant 0 : index
    %c0_8 = arith.constant 0 : index
    %22 = vector.load %arg4[%c0_6, %c0_7, %c0_8] : memref<1x1x32xf32, #tpu.memory_space<vmem>>, vector<1x1x32xf32>
    %23 = vector.shape_cast %22 : vector<1x1x32xf32> to vector<1x32xf32>
    %24 = vector.broadcast %23 : vector<1x32xf32> to vector<32x32xf32>
    %25 = arith.mulf %21, %24 : vector<32x32xf32>
    %c0_9 = arith.constant 0 : index
    %c0_10 = arith.constant 0 : index
    %c0_11 = arith.constant 0 : index
    %26 = vector.load %arg5[%c0_9, %c0_10, %c0_11] : memref<1x1x32xf32, #tpu.memory_space<vmem>>, vector<1x1x32xf32>
    %27 = vector.shape_cast %26 : vector<1x1x32xf32> to vector<1x32xf32>
    %28 = vector.broadcast %27 : vector<1x32xf32> to vector<32x32xf32>
    %29 = arith.addf %25, %28 : vector<32x32xf32>
    %c0_12 = arith.constant 0 : index
    %c0_13 = arith.constant 0 : index
    %c0_14 = arith.constant 0 : index
    %30 = vector.load %arg6[%c0_12, %c0_13, %c0_14] : memref<1x32x48xf32, #tpu.memory_space<vmem>>, vector<1x32x48xf32>
    %31 = vector.shape_cast %30 : vector<1x32x48xf32> to vector<32x48xf32>
    %cst_15 = arith.constant dense<0.000000e+00> : vector<32x48xf32>
    %32 = tpu.matmul %29, %31, %cst_15 {dimension_numbers = #tpu.dot_dimension_numbers<[1], [0], [0], [1], [0, 0, 1, 1], [], []>} : vector<32x32xf32>, vector<32x48xf32>, vector<32x48xf32> -> vector<32x48xf32>
    %c0_16 = arith.constant 0 : index
    %c0_17 = arith.constant 0 : index
    %c0_18 = arith.constant 0 : index
    %33 = vector.load %arg7[%c0_16, %c0_17, %c0_18] : memref<1x1x48xf32, #tpu.memory_space<vmem>>, vector<1x1x48xf32>
    %34 = vector.shape_cast %33 : vector<1x1x48xf32> to vector<1x48xf32>
    %35 = vector.broadcast %34 : vector<1x48xf32> to vector<32x48xf32>
    %36 = arith.addf %32, %35 : vector<32x48xf32>
    %37 = vector.shape_cast %36 : vector<32x48xf32> to vector<2x16x48xf32>
    %c0_19 = arith.constant 0 : index
    %c0_20 = arith.constant 0 : index
    %38 = vector.load %arg3[%c0_19, %c0_20] : memref<16x16xf32, #tpu.memory_space<vmem>>, vector<16x16xf32>
    %cst_21 = arith.constant 0.000000e+00 : f32
    %39 = vector.broadcast %cst_21 : f32 to vector<32x32xf32>
    %40 = vector.extract_strided_slice %37 {offsets = [0, 0, 0], sizes = [2, 16, 8], strides = [1, 1, 1]} : vector<2x16x48xf32> to vector<2x16x8xf32>
    %41 = vector.extract_strided_slice %37 {offsets = [0, 0, 16], sizes = [2, 16, 8], strides = [1, 1, 1]} : vector<2x16x48xf32> to vector<2x16x8xf32>
    %42 = vector.extract_strided_slice %37 {offsets = [0, 0, 32], sizes = [2, 16, 8], strides = [1, 1, 1]} : vector<2x16x48xf32> to vector<2x16x8xf32>
    "tpu.trace_start"() <{level = 10 : i32, message = "bqd,bkd->bqk"}> : () -> ()
    %cst_22 = arith.constant dense<0.000000e+00> : vector<2x16x16xf32>
    %43 = tpu.matmul %40, %41, %cst_22 {dimension_numbers = #tpu.dot_dimension_numbers<[2], [2], [1], [1], [0, 0, 0, 1, 1, 1], [0], [0]>} : vector<2x16x8xf32>, vector<2x16x8xf32>, vector<2x16x16xf32> -> vector<2x16x16xf32>
    "tpu.trace_stop"() : () -> ()
    %cst_23 = arith.constant 0.353553385 : f32
    %44 = vector.broadcast %cst_23 : f32 to vector<2x16x16xf32>
    %45 = arith.mulf %43, %44 : vector<2x16x16xf32>
    %46 = vector.shape_cast %38 : vector<16x16xf32> to vector<1x16x16xf32>
    %47 = vector.broadcast %46 : vector<1x16x16xf32> to vector<2x16x16xf32>
    %48 = arith.addf %45, %47 : vector<2x16x16xf32>
    %cst_24 = arith.constant dense<0xFF800000> : vector<2x16xf32>
    %49 = vector.multi_reduction <maximumf>, %48, %cst_24 [2] : vector<2x16x16xf32> to vector<2x16xf32>
    %50 = vector.shape_cast %49 : vector<2x16xf32> to vector<2x16x1xf32>
    %51 = vector.broadcast %50 : vector<2x16x1xf32> to vector<2x16x16xf32>
    %52 = arith.subf %48, %51 : vector<2x16x16xf32>
    %53 = math.exp %52 : vector<2x16x16xf32>
    %cst_25 = arith.constant dense<0.000000e+00> : vector<2x16xf32>
    %54 = vector.multi_reduction <add>, %53, %cst_25 [2] : vector<2x16x16xf32> to vector<2x16xf32>
    %55 = vector.shape_cast %54 : vector<2x16xf32> to vector<2x16x1xf32>
    %56 = tpu.reciprocal %55 {approx = true} : vector<2x16x1xf32> -> vector<2x16x1xf32>
    %57 = vector.broadcast %56 : vector<2x16x1xf32> to vector<2x16x16xf32>
    %58 = arith.mulf %53, %57 : vector<2x16x16xf32>
    "tpu.trace_start"() <{level = 10 : i32, message = "bqk,bkd->bqd"}> : () -> ()
    %cst_26 = arith.constant dense<0.000000e+00> : vector<2x16x8xf32>
    %59 = tpu.matmul %58, %42, %cst_26 {dimension_numbers = #tpu.dot_dimension_numbers<[2], [1], [1], [2], [0, 0, 0, 1, 1, 2], [0], [0]>} : vector<2x16x16xf32>, vector<2x16x8xf32>, vector<2x16x8xf32> -> vector<2x16x8xf32>
    "tpu.trace_stop"() : () -> ()
    %60 = vector.shape_cast %59 : vector<2x16x8xf32> to vector<32x8xf32>
    %c0_27 = arith.constant 0 : index
    %c0_28 = arith.constant 0 : index
    %c0_29 = arith.constant 0 : index
    %c0_30 = arith.constant 0 : index
    %61 = vector.load %arg8[%c0_27, %c0_28, %c0_29, %c0_30] : memref<1x2x8x32xf32, #tpu.memory_space<vmem>>, vector<1x1x8x32xf32>
    %62 = vector.shape_cast %61 : vector<1x1x8x32xf32> to vector<8x32xf32>
    %cst_31 = arith.constant dense<0.000000e+00> : vector<32x32xf32>
    %63 = tpu.matmul %60, %62, %cst_31 {dimension_numbers = #tpu.dot_dimension_numbers<[1], [0], [0], [1], [0, 0, 1, 1], [], []>} : vector<32x8xf32>, vector<8x32xf32>, vector<32x32xf32> -> vector<32x32xf32>
    %64 = arith.addf %39, %63 : vector<32x32xf32>
    %65 = vector.extract_strided_slice %37 {offsets = [0, 0, 8], sizes = [2, 16, 8], strides = [1, 1, 1]} : vector<2x16x48xf32> to vector<2x16x8xf32>
    %66 = vector.extract_strided_slice %37 {offsets = [0, 0, 24], sizes = [2, 16, 8], strides = [1, 1, 1]} : vector<2x16x48xf32> to vector<2x16x8xf32>
    %67 = vector.extract_strided_slice %37 {offsets = [0, 0, 40], sizes = [2, 16, 8], strides = [1, 1, 1]} : vector<2x16x48xf32> to vector<2x16x8xf32>
    "tpu.trace_start"() <{level = 10 : i32, message = "bqd,bkd->bqk"}> : () -> ()
    %cst_32 = arith.constant dense<0.000000e+00> : vector<2x16x16xf32>
    %68 = tpu.matmul %65, %66, %cst_32 {dimension_numbers = #tpu.dot_dimension_numbers<[2], [2], [1], [1], [0, 0, 0, 1, 1, 1], [0], [0]>} : vector<2x16x8xf32>, vector<2x16x8xf32>, vector<2x16x16xf32> -> vector<2x16x16xf32>
    "tpu.trace_stop"() : () -> ()
    %cst_33 = arith.constant 0.353553385 : f32
    %69 = vector.broadcast %cst_33 : f32 to vector<2x16x16xf32>
    %70 = arith.mulf %68, %69 : vector<2x16x16xf32>
    %71 = vector.shape_cast %38 : vector<16x16xf32> to vector<1x16x16xf32>
    %72 = vector.broadcast %71 : vector<1x16x16xf32> to vector<2x16x16xf32>
    %73 = arith.addf %70, %72 : vector<2x16x16xf32>
    %cst_34 = arith.constant dense<0xFF800000> : vector<2x16xf32>
    %74 = vector.multi_reduction <maximumf>, %73, %cst_34 [2] : vector<2x16x16xf32> to vector<2x16xf32>
    %75 = vector.shape_cast %74 : vector<2x16xf32> to vector<2x16x1xf32>
    %76 = vector.broadcast %75 : vector<2x16x1xf32> to vector<2x16x16xf32>
    %77 = arith.subf %73, %76 : vector<2x16x16xf32>
    %78 = math.exp %77 : vector<2x16x16xf32>
    %cst_35 = arith.constant dense<0.000000e+00> : vector<2x16xf32>
    %79 = vector.multi_reduction <add>, %78, %cst_35 [2] : vector<2x16x16xf32> to vector<2x16xf32>
    %80 = vector.shape_cast %79 : vector<2x16xf32> to vector<2x16x1xf32>
    %81 = tpu.reciprocal %80 {approx = true} : vector<2x16x1xf32> -> vector<2x16x1xf32>
    %82 = vector.broadcast %81 : vector<2x16x1xf32> to vector<2x16x16xf32>
    %83 = arith.mulf %78, %82 : vector<2x16x16xf32>
    "tpu.trace_start"() <{level = 10 : i32, message = "bqk,bkd->bqd"}> : () -> ()
    %cst_36 = arith.constant dense<0.000000e+00> : vector<2x16x8xf32>
    %84 = tpu.matmul %83, %67, %cst_36 {dimension_numbers = #tpu.dot_dimension_numbers<[2], [1], [1], [2], [0, 0, 0, 1, 1, 2], [0], [0]>} : vector<2x16x16xf32>, vector<2x16x8xf32>, vector<2x16x8xf32> -> vector<2x16x8xf32>
    "tpu.trace_stop"() : () -> ()
    %85 = vector.shape_cast %84 : vector<2x16x8xf32> to vector<32x8xf32>
    %c0_37 = arith.constant 0 : index
    %c1 = arith.constant 1 : index
    %c0_38 = arith.constant 0 : index
    %c0_39 = arith.constant 0 : index
    %86 = vector.load %arg8[%c0_37, %c1, %c0_38, %c0_39] : memref<1x2x8x32xf32, #tpu.memory_space<vmem>>, vector<1x1x8x32xf32>
    %87 = vector.shape_cast %86 : vector<1x1x8x32xf32> to vector<8x32xf32>
    %cst_40 = arith.constant dense<0.000000e+00> : vector<32x32xf32>
    %88 = tpu.matmul %85, %87, %cst_40 {dimension_numbers = #tpu.dot_dimension_numbers<[1], [0], [0], [1], [0, 0, 1, 1], [], []>} : vector<32x8xf32>, vector<8x32xf32>, vector<32x32xf32> -> vector<32x32xf32>
    %89 = arith.addf %64, %88 : vector<32x32xf32>
    %c0_41 = arith.constant 0 : index
    %c0_42 = arith.constant 0 : index
    %c0_43 = arith.constant 0 : index
    %90 = vector.load %arg9[%c0_41, %c0_42, %c0_43] : memref<1x1x32xf32, #tpu.memory_space<vmem>>, vector<1x1x32xf32>
    %91 = vector.shape_cast %90 : vector<1x1x32xf32> to vector<1x32xf32>
    %92 = vector.broadcast %91 : vector<1x32xf32> to vector<32x32xf32>
    %93 = arith.addf %89, %92 : vector<32x32xf32>
    %94 = arith.addf %3, %93 : vector<32x32xf32>
    %cst_44 = arith.constant dense<0.000000e+00> : vector<32xf32>
    %95 = vector.multi_reduction <add>, %94, %cst_44 [1] : vector<32x32xf32> to vector<32xf32>
    %96 = vector.shape_cast %95 : vector<32xf32> to vector<32x1xf32>
    %cst_45 = arith.constant 3.200000e+01 : f32
    %97 = vector.broadcast %cst_45 : f32 to vector<32x1xf32>
    %98 = arith.divf %96, %97 : vector<32x1xf32>
    %99 = vector.broadcast %98 : vector<32x1xf32> to vector<32x32xf32>
    %100 = arith.subf %94, %99 : vector<32x32xf32>
    %101 = arith.mulf %100, %100 : vector<32x32xf32>
    %cst_46 = arith.constant dense<0.000000e+00> : vector<32xf32>
    %102 = vector.multi_reduction <add>, %101, %cst_46 [1] : vector<32x32xf32> to vector<32xf32>
    %103 = vector.shape_cast %102 : vector<32xf32> to vector<32x1xf32>
    %cst_47 = arith.constant 3.200000e+01 : f32
    %104 = vector.broadcast %cst_47 : f32 to vector<32x1xf32>
    %105 = arith.divf %103, %104 : vector<32x1xf32>
    %106 = vector.broadcast %98 : vector<32x1xf32> to vector<32x32xf32>
    %107 = arith.subf %94, %106 : vector<32x32xf32>
    %cst_48 = arith.constant 9.99999974E-6 : f32
    %108 = vector.broadcast %cst_48 : f32 to vector<32x1xf32>
    %109 = arith.addf %105, %108 : vector<32x1xf32>
    %110 = math.rsqrt %109 : vector<32x1xf32>
    %111 = vector.broadcast %110 : vector<32x1xf32> to vector<32x32xf32>
    %112 = arith.mulf %107, %111 : vector<32x32xf32>
    %c0_49 = arith.constant 0 : index
    %c0_50 = arith.constant 0 : index
    %c0_51 = arith.constant 0 : index
    %113 = vector.load %arg10[%c0_49, %c0_50, %c0_51] : memref<1x1x32xf32, #tpu.memory_space<vmem>>, vector<1x1x32xf32>
    %114 = vector.shape_cast %113 : vector<1x1x32xf32> to vector<1x32xf32>
    %115 = vector.broadcast %114 : vector<1x32xf32> to vector<32x32xf32>
    %116 = arith.mulf %112, %115 : vector<32x32xf32>
    %c0_52 = arith.constant 0 : index
    %c0_53 = arith.constant 0 : index
    %c0_54 = arith.constant 0 : index
    %117 = vector.load %arg11[%c0_52, %c0_53, %c0_54] : memref<1x1x32xf32, #tpu.memory_space<vmem>>, vector<1x1x32xf32>
    %118 = vector.shape_cast %117 : vector<1x1x32xf32> to vector<1x32xf32>
    %119 = vector.broadcast %118 : vector<1x32xf32> to vector<32x32xf32>
    %120 = arith.addf %116, %119 : vector<32x32xf32>
    %c0_55 = arith.constant 0 : index
    %c0_56 = arith.constant 0 : index
    %c0_57 = arith.constant 0 : index
    %121 = vector.load %arg12[%c0_55, %c0_56, %c0_57] : memref<1x32x128xf32, #tpu.memory_space<vmem>>, vector<1x32x128xf32>
    %122 = vector.shape_cast %121 : vector<1x32x128xf32> to vector<32x128xf32>
    %cst_58 = arith.constant dense<0.000000e+00> : vector<32x128xf32>
    %123 = tpu.matmul %120, %122, %cst_58 {dimension_numbers = #tpu.dot_dimension_numbers<[1], [0], [0], [1], [0, 0, 1, 1], [], []>} : vector<32x32xf32>, vector<32x128xf32>, vector<32x128xf32> -> vector<32x128xf32>
    %c0_59 = arith.constant 0 : index
    %c0_60 = arith.constant 0 : index
    %c0_61 = arith.constant 0 : index
    %124 = vector.load %arg13[%c0_59, %c0_60, %c0_61] : memref<1x1x128xf32, #tpu.memory_space<vmem>>, vector<1x1x128xf32>
    %125 = vector.shape_cast %124 : vector<1x1x128xf32> to vector<1x128xf32>
    %126 = vector.broadcast %125 : vector<1x128xf32> to vector<32x128xf32>
    %127 = arith.addf %123, %126 : vector<32x128xf32>
    %cst_62 = arith.constant 0.000000e+00 : f32
    %128 = vector.broadcast %cst_62 : f32 to vector<32x128xf32>
    %129 = arith.maximumf %127, %128 : vector<32x128xf32>
    %c0_63 = arith.constant 0 : index
    %c0_64 = arith.constant 0 : index
    %c0_65 = arith.constant 0 : index
    %130 = vector.load %arg14[%c0_63, %c0_64, %c0_65] : memref<1x128x32xf32, #tpu.memory_space<vmem>>, vector<1x128x32xf32>
    %131 = vector.shape_cast %130 : vector<1x128x32xf32> to vector<128x32xf32>
    %cst_66 = arith.constant dense<0.000000e+00> : vector<32x32xf32>
    %132 = tpu.matmul %129, %131, %cst_66 {dimension_numbers = #tpu.dot_dimension_numbers<[1], [0], [0], [1], [0, 0, 1, 1], [], []>} : vector<32x128xf32>, vector<128x32xf32>, vector<32x32xf32> -> vector<32x32xf32>
    %c0_67 = arith.constant 0 : index
    %c0_68 = arith.constant 0 : index
    %c0_69 = arith.constant 0 : index
    %133 = vector.load %arg15[%c0_67, %c0_68, %c0_69] : memref<1x1x32xf32, #tpu.memory_space<vmem>>, vector<1x1x32xf32>
    %134 = vector.shape_cast %133 : vector<1x1x32xf32> to vector<1x32xf32>
    %135 = vector.broadcast %134 : vector<1x32xf32> to vector<32x32xf32>
    %136 = arith.addf %132, %135 : vector<32x32xf32>
    %137 = arith.addf %94, %136 : vector<32x32xf32>
    %c0_70 = arith.constant 0 : index
    %c0_71 = arith.constant 0 : index
    %138 = vector.load %arg17[%c0_70, %c0_71] : memref<32x32xf32, #tpu.memory_space<vmem>>, vector<32x32xf32>
    tpu.vector_store %arg17[%c0_70, %c0_71], %137 {strides = array<i32>} : memref<32x32xf32, #tpu.memory_space<vmem>>, vector<32x32xf32>,
    %c1_i32 = arith.constant 1 : i32
    %139 = arith.cmpi eq, %arg0, %c1_i32 : i32
    %140 = arith.extui %139 : i1 to i32
    %c0_i32_72 = arith.constant 0 : i32
    %141 = arith.cmpi ne, %140, %c0_i32_72 : i32
    scf.if %141 {
      %142 = vector.shape_cast %137 : vector<32x32xf32> to vector<2x16x32xf32>
      %c0_73 = arith.constant 0 : index
      %c0_74 = arith.constant 0 : index
      %c0_75 = arith.constant 0 : index
      %143 = vector.load %arg16[%c0_73, %c0_74, %c0_75] : memref<2x16x32xf32, #tpu.memory_space<vmem>>, vector<2x16x32xf32>
      tpu.vector_store %arg16[%c0_73, %c0_74, %c0_75], %142 {strides = array<i32>} : memref<2x16x32xf32, #tpu.memory_space<vmem>>, vector<2x16x32xf32>,
    } else {
    }
    return
  }
  func.func @transform_0(%arg0: i32) -> (i32, i32, i32) {
    %c0_i32 = arith.constant 0 : i32
    %c0_i32_0 = arith.constant 0 : i32
    %c0_i32_1 = arith.constant 0 : i32
    %c0_i32_2 = arith.constant 0 : i32
    return %c0_i32, %c0_i32_0, %c0_i32_1 : i32, i32, i32
  }
  func.func @transform_1(%arg0: i32) -> (i32, i32) {
    %c0_i32 = arith.constant 0 : i32
    %c0_i32_0 = arith.constant 0 : i32
    %c0_i32_1 = arith.constant 0 : i32
    return %c0_i32, %c0_i32_0 : i32, i32
  }
  func.func @transform_2(%arg0: i32) -> (i32, i32) {
    %c0_i32 = arith.constant 0 : i32
    %c0_i32_0 = arith.constant 0 : i32
    %c0_i32_1 = arith.constant 0 : i32
    return %c0_i32, %c0_i32_0 : i32, i32
  }
  func.func @transform_3(%arg0: i32) -> (i32, i32, i32) {
    %c0_i32 = arith.constant 0 : i32
    %c0_i32_0 = arith.constant 0 : i32
    %c0_i32_1 = arith.constant 0 : i32
    return %arg0, %c0_i32, %c0_i32_0 : i32, i32, i32
  }
  func.func @transform_4(%arg0: i32) -> (i32, i32, i32) {
    %c0_i32 = arith.constant 0 : i32
    %c0_i32_0 = arith.constant 0 : i32
    %c0_i32_1 = arith.constant 0 : i32
    return %arg0, %c0_i32, %c0_i32_0 : i32, i32, i32
  }
  func.func @transform_5(%arg0: i32) -> (i32, i32, i32) {
    %c0_i32 = arith.constant 0 : i32
    %c0_i32_0 = arith.constant 0 : i32
    %c0_i32_1 = arith.constant 0 : i32
    return %arg0, %c0_i32, %c0_i32_0 : i32, i32, i32
  }
  func.func @transform_6(%arg0: i32) -> (i32, i32, i32) {
    %c0_i32 = arith.constant 0 : i32
    %c0_i32_0 = arith.constant 0 : i32
    %c0_i32_1 = arith.constant 0 : i32
    return %arg0, %c0_i32, %c0_i32_0 : i32, i32, i32
  }
  func.func @transform_7(%arg0: i32) -> (i32, i32, i32, i32) {
    %c0_i32 = arith.constant 0 : i32
    %c0_i32_0 = arith.constant 0 : i32
    %c0_i32_1 = arith.constant 0 : i32
    %c0_i32_2 = arith.constant 0 : i32
    return %arg0, %c0_i32, %c0_i32_0, %c0_i32_1 : i32, i32, i32, i32
  }
  func.func @transform_8(%arg0: i32) -> (i32, i32, i32) {
    %c0_i32 = arith.constant 0 : i32
    %c0_i32_0 = arith.constant 0 : i32
    %c0_i32_1 = arith.constant 0 : i32
    return %arg0, %c0_i32, %c0_i32_0 : i32, i32, i32
  }
  func.func @transform_9(%arg0: i32) -> (i32, i32, i32) {
    %c0_i32 = arith.constant 0 : i32
    %c0_i32_0 = arith.constant 0 : i32
    %c0_i32_1 = arith.constant 0 : i32
    return %arg0, %c0_i32, %c0_i32_0 : i32, i32, i32
  }
  func.func @transform_10(%arg0: i32) -> (i32, i32, i32) {
    %c0_i32 = arith.constant 0 : i32
    %c0_i32_0 = arith.constant 0 : i32
    %c0_i32_1 = arith.constant 0 : i32
    return %arg0, %c0_i32, %c0_i32_0 : i32, i32, i32
  }
  func.func @transform_11(%arg0: i32) -> (i32, i32, i32) {
    %c0_i32 = arith.constant 0 : i32
    %c0_i32_0 = arith.constant 0 : i32
    %c0_i32_1 = arith.constant 0 : i32
    return %arg0, %c0_i32, %c0_i32_0 : i32, i32, i32
  }
  func.func @transform_12(%arg0: i32) -> (i32, i32, i32) {
    %c0_i32 = arith.constant 0 : i32
    %c0_i32_0 = arith.constant 0 : i32
    %c0_i32_1 = arith.constant 0 : i32
    return %arg0, %c0_i32, %c0_i32_0 : i32, i32, i32
  }
  func.func @transform_13(%arg0: i32) -> (i32, i32, i32) {
    %c0_i32 = arith.constant 0 : i32
    %c0_i32_0 = arith.constant 0 : i32
    %c0_i32_1 = arith.constant 0 : i32
    return %arg0, %c0_i32, %c0_i32_0 : i32, i32, i32
  }
  func.func @transform_14(%arg0: i32) -> (i32, i32, i32) {
    %c0_i32 = arith.constant 0 : i32
    %c0_i32_0 = arith.constant 0 : i32
    %c0_i32_1 = arith.constant 0 : i32
    return %arg0, %c0_i32, %c0_i32_0 : i32, i32, i32
  }
  func.func @transform_15(%arg0: i32) -> (i32, i32, i32) {
    %c0_i32 = arith.constant 0 : i32
    %c0_i32_0 = arith.constant 0 : i32
    %c0_i32_1 = arith.constant 0 : i32
    %c0_i32_2 = arith.constant 0 : i32
    return %c0_i32, %c0_i32_0, %c0_i32_1 : i32, i32, i32
  }
}

</mosaic_0001>

<llo_original>
// kernel: tpu_custom_call.1
$region0: #{tpu_custom_call.1}
  #allocation0 [shape = 'u32[]', space=smem, size = 0x4, offset = 0x4, fixed_abs, tag = 'smem constant byte address 0x4 - core index']
  #allocation1 [shape = 'u32[72,128]{1,0:T(1,128)}', space=vmem, size = 0x9000, scoped, tag = 'internal scratch']
  #allocation2 [shape = 'f32[32,32]{1,0:T(8,128)}', space=vmem, size = 0x4000, scoped, tag = 'scratch operand']
  %s0 = inlined_call_operand.vmem [shape: f32[2,16,32], index: 0, kind: input, shape index: {}]
  %s1 = inlined_call_operand.vmem [shape: f32[16,32], index: 1, kind: input, shape index: {}]
  %s2 = inlined_call_operand.vmem [shape: f32[16,16], index: 2, kind: input, shape index: {}]
  %s3 = inlined_call_operand.vmem [shape: f32[2,1,32], index: 3, kind: input, shape index: {}]
  %s4 = inlined_call_operand.vmem [shape: f32[2,1,32], index: 4, kind: input, shape index: {}]
  %s5 = inlined_call_operand.vmem [shape: f32[2,32,48], index: 5, kind: input, shape index: {}]
  %s6 = inlined_call_operand.vmem [shape: f32[2,1,48], index: 6, kind: input, shape index: {}]
  %s7 = inlined_call_operand.vmem [shape: f32[2,2,8,32], index: 7, kind: input, shape index: {}]
  %s8 = inlined_call_operand.vmem [shape: f32[2,1,32], index: 8, kind: input, shape index: {}]
  %s9 = inlined_call_operand.vmem [shape: f32[2,1,32], index: 9, kind: input, shape index: {}]
  %s10 = inlined_call_operand.vmem [shape: f32[2,1,32], index: 10, kind: input, shape index: {}]
  %s11 = inlined_call_operand.vmem [shape: f32[2,32,128], index: 11, kind: input, shape index: {}]
  %s12 = inlined_call_operand.vmem [shape: f32[2,1,128], index: 12, kind: input, shape index: {}]
  %s13 = inlined_call_operand.vmem [shape: f32[2,128,32], index: 13, kind: input, shape index: {}]
  %s14 = inlined_call_operand.vmem [shape: f32[2,1,32], index: 14, kind: input, shape index: {}]
  %s15 = inlined_call_operand.hbm [shape: f32[2,16,32], index: 15, kind: output, shape index: {}]
  %s16 = sld [smem:[#allocation0]]
  $region101: #{tpu_custom_call.1} parent=0
    _
  %s18 = ssub.s32 1, %s16
  %s19 = scalar_select 0, %s18, %s16
  $region1: #{tpu_custom_call.1} parent=0
    #allocation3 [shape = 'u8[16384]{0}', space=vmem, size = 0x4000, scoped, tag = 'output window, operand 0, single buffered']
    #allocation4 [shape = 's32[2]{0}', space=sflag, size = 0x8, scoped, tag = 'scoped memory for tpu_custom_call.1']
    %20 = vsyncpa [#allocation4], 0
    loop: start=0, step=1, limit=4
    $region2: #{tpu_custom_call.1} parent=1 // loop_pre_header
      _
    $region3: #{tpu_custom_call.1} parent=1 // loop_header
      %s22 = sphi 0, %s26
      %p23 = scmp.ge.s32.totalorder %s22, 4
      %s30 = sphi 0, %s30
      %s32 = sphi 0, %s30
      %s33 = sphi 0, %s32
      %s47 = sphi 0, %s33
      %s51 = sphi 0, %s51
      %s53 = sphi 0, %s51
      %s54 = sphi 0, %s53
      %s68 = sphi 0, %s54
      %s72 = sphi 0, %s72
      %s74 = sphi 0, %s72
      %s75 = sphi 0, %s74
      %s89 = sphi 0, %s75
      %s95 = sphi 0, %s97
      %s98 = sphi 0, %s95
      %s99 = sphi 0, %s98
      %s115 = sphi 0, %s99
      %s121 = sphi 0, %s123
      %s124 = sphi 0, %s121
      %s125 = sphi 0, %s124
      %s141 = sphi 0, %s125
      %s147 = sphi 0, %s149
      %s150 = sphi 0, %s147
      %s151 = sphi 0, %s150
      %s167 = sphi 0, %s151
      %s173 = sphi 0, %s175
      %s176 = sphi 0, %s173
      %s177 = sphi 0, %s176
      %s193 = sphi 0, %s177
      %s199 = sphi 0, %s201
      %s202 = sphi 0, %s199
      %s203 = sphi 0, %s202
      %s219 = sphi 0, %s203
      %s225 = sphi 0, %s227
      %s228 = sphi 0, %s225
      %s229 = sphi 0, %s228
      %s245 = sphi 0, %s229
      %s251 = sphi 0, %s253
      %s254 = sphi 0, %s251
      %s255 = sphi 0, %s254
      %s271 = sphi 0, %s255
      %s277 = sphi 0, %s279
      %s280 = sphi 0, %s277
      %s281 = sphi 0, %s280
      %s297 = sphi 0, %s281
      %s303 = sphi 0, %s305
      %s306 = sphi 0, %s303
      %s307 = sphi 0, %s306
      %s323 = sphi 0, %s307
      %s329 = sphi 0, %s331
      %s332 = sphi 0, %s329
      %s333 = sphi 0, %s332
      %s349 = sphi 0, %s333
      %s355 = sphi 0, %s357
      %s358 = sphi 0, %s355
      %s359 = sphi 0, %s358
      %s375 = sphi 0, %s359
      %s381 = sphi 0, %s383
      %s384 = sphi 0, %s381
      %s385 = sphi 0, %s384
      %s401 = sphi 0, %s385
      %s405 = sphi 0, %s405
      %s407 = sphi 0, %s405
      %s408 = sphi 0, %s407
      %s422 = sphi 0, %s408
    $region4: #{tpu_custom_call.1} parent=1 // loop_header_branch
      %25 = sbr.rel (%p23) target = $region8
    $region5: #{tpu_custom_call.1} parent=1 // loop_body
      %s27 = ssub.s32 %s22, 1
      %s28 = ssub.s32 %s22, 2
      %s29 = sadd.s32 %s22, 1
      %s31 = sadd.s32 %s30, 1
      %p34 = scmp.eq.s32.totalorder %s22, 1
      %p35 = scmp.ne.s32.totalorder %s30, %s32
      %p36 = scmp.eq.s32.totalorder %s22, 0
      %p37 = por %p35, %p36
      %p38 = scmp.ne.s32.totalorder %s30, %s32
      %p39 = scmp.eq.s32.totalorder %s27, 1
      %p40 = por %p38, %p39
      %p41 = scmp.ne.s32.totalorder %s32, %s33
      %p42 = scmp.eq.s32.totalorder %s27, 0
      %p43 = por %p41, %p42
      %p44 = scmp.ne.s32.totalorder %s32, %s33
      %p45 = scmp.eq.s32.totalorder %s28, 1
      %p46 = por %p44, %p45
      %p48 = scmp.ne.s32.totalorder %s33, %s47
      %p49 = scmp.eq.s32.totalorder %s28, 0
      %p50 = por %p48, %p49
      %s52 = sadd.s32 %s51, 1
      %p55 = scmp.eq.s32.totalorder %s22, 1
      %p56 = scmp.ne.s32.totalorder %s51, %s53
      %p57 = scmp.eq.s32.totalorder %s22, 0
      %p58 = por %p56, %p57
      %p59 = scmp.ne.s32.totalorder %s51, %s53
      %p60 = scmp.eq.s32.totalorder %s27, 1
      %p61 = por %p59, %p60
      %p62 = scmp.ne.s32.totalorder %s53, %s54
      %p63 = scmp.eq.s32.totalorder %s27, 0
      %p64 = por %p62, %p63
      %p65 = scmp.ne.s32.totalorder %s53, %s54
      %p66 = scmp.eq.s32.totalorder %s28, 1
      %p67 = por %p65, %p66
      %p69 = scmp.ne.s32.totalorder %s54, %s68
      %p70 = scmp.eq.s32.totalorder %s28, 0
      %p71 = por %p69, %p70
      %s73 = sadd.s32 %s72, 1
      %p76 = scmp.eq.s32.totalorder %s22, 1
      %p77 = scmp.ne.s32.totalorder %s72, %s74
      %p78 = scmp.eq.s32.totalorder %s22, 0
      %p79 = por %p77, %p78
      %p80 = scmp.ne.s32.totalorder %s72, %s74
      %p81 = scmp.eq.s32.totalorder %s27, 1
      %p82 = por %p80, %p81
      %p83 = scmp.ne.s32.totalorder %s74, %s75
      %p84 = scmp.eq.s32.totalorder %s27, 0
      %p85 = por %p83, %p84
      %p86 = scmp.ne.s32.totalorder %s74, %s75
      %p87 = scmp.eq.s32.totalorder %s28, 1
      %p88 = por %p86, %p87
      %p90 = scmp.ne.s32.totalorder %s75, %s89
      %p91 = scmp.eq.s32.totalorder %s28, 0
      %p92 = por %p90, %p91
      %s93 = ssub.s32 %s22, %s29
      %p94 = scmp.eq.s32.totalorder %s93, 0
      %s96 = sadd.s32 %s95, 1
      %s97 = scalar_select %p94, %s95, %s96
      %p100 = pneg %p94
      %p101 = scmp.eq.s32.totalorder %s22, 1
      %p102 = por %p100, %p101
      %p103 = scmp.ne.s32.totalorder %s95, %s98
      %p104 = scmp.eq.s32.totalorder %s22, 0
      %p105 = por %p103, %p104
      %p106 = scmp.ne.s32.totalorder %s95, %s98
      %p107 = scmp.eq.s32.totalorder %s27, 1
      %p108 = por %p106, %p107
      %p109 = scmp.ne.s32.totalorder %s98, %s99
      %p110 = scmp.eq.s32.totalorder %s27, 0
      %p111 = por %p109, %p110
      %p112 = scmp.ne.s32.totalorder %s98, %s99
      %p113 = scmp.eq.s32.totalorder %s28, 1
      %p114 = por %p112, %p113
      %p116 = scmp.ne.s32.totalorder %s99, %s115
      %p117 = scmp.eq.s32.totalorder %s28, 0
      %p118 = por %p116, %p117
      %s119 = ssub.s32 %s22, %s29
      %p120 = scmp.eq.s32.totalorder %s119, 0
      %s122 = sadd.s32 %s121, 1
      %s123 = scalar_select %p120, %s121, %s122
      %p126 = pneg %p120
      %p127 = scmp.eq.s32.totalorder %s22, 1
      %p128 = por %p126, %p127
      %p129 = scmp.ne.s32.totalorder %s121, %s124
      %p130 = scmp.eq.s32.totalorder %s22, 0
      %p131 = por %p129, %p130
      %p132 = scmp.ne.s32.totalorder %s121, %s124
      %p133 = scmp.eq.s32.totalorder %s27, 1
      %p134 = por %p132, %p133
      %p135 = scmp.ne.s32.totalorder %s124, %s125
      %p136 = scmp.eq.s32.totalorder %s27, 0
      %p137 = por %p135, %p136
      %p138 = scmp.ne.s32.totalorder %s124, %s125
      %p139 = scmp.eq.s32.totalorder %s28, 1
      %p140 = por %p138, %p139
      %p142 = scmp.ne.s32.totalorder %s125, %s141
      %p143 = scmp.eq.s32.totalorder %s28, 0
      %p144 = por %p142, %p143
      %s145 = ssub.s32 %s22, %s29
      %p146 = scmp.eq.s32.totalorder %s145, 0
      %s148 = sadd.s32 %s147, 1
      %s149 = scalar_select %p146, %s147, %s148
      %p152 = pneg %p146
      %p153 = scmp.eq.s32.totalorder %s22, 1
      %p154 = por %p152, %p153
      %p155 = scmp.ne.s32.totalorder %s147, %s150
      %p156 = scmp.eq.s32.totalorder %s22, 0
      %p157 = por %p155, %p156
      %p158 = scmp.ne.s32.totalorder %s147, %s150
      %p159 = scmp.eq.s32.totalorder %s27, 1
      %p160 = por %p158, %p159
      %p161 = scmp.ne.s32.totalorder %s150, %s151
      %p162 = scmp.eq.s32.totalorder %s27, 0
      %p163 = por %p161, %p162
      %p164 = scmp.ne.s32.totalorder %s150, %s151
      %p165 = scmp.eq.s32.totalorder %s28, 1
      %p166 = por %p164, %p165
      %p168 = scmp.ne.s32.totalorder %s151, %s167
      %p169 = scmp.eq.s32.totalorder %s28, 0
      %p170 = por %p168, %p169
      %s171 = ssub.s32 %s22, %s29
      %p172 = scmp.eq.s32.totalorder %s171, 0
      %s174 = sadd.s32 %s173, 1
      %s175 = scalar_select %p172, %s173, %s174
      %p178 = pneg %p172
      %p179 = scmp.eq.s32.totalorder %s22, 1
      %p180 = por %p178, %p179
      %p181 = scmp.ne.s32.totalorder %s173, %s176
      %p182 = scmp.eq.s32.totalorder %s22, 0
      %p183 = por %p181, %p182
      %p184 = scmp.ne.s32.totalorder %s173, %s176
      %p185 = scmp.eq.s32.totalorder %s27, 1
      %p186 = por %p184, %p185
      %p187 = scmp.ne.s32.totalorder %s176, %s177
      %p188 = scmp.eq.s32.totalorder %s27, 0
      %p189 = por %p187, %p188
      %p190 = scmp.ne.s32.totalorder %s176, %s177
      %p191 = scmp.eq.s32.totalorder %s28, 1
      %p192 = por %p190, %p191
      %p194 = scmp.ne.s32.totalorder %s177, %s193
      %p195 = scmp.eq.s32.totalorder %s28, 0
      %p196 = por %p194, %p195
      %s197 = ssub.s32 %s22, %s29
      %p198 = scmp.eq.s32.totalorder %s197, 0
      %s200 = sadd.s32 %s199, 1
      %s201 = scalar_select %p198, %s199, %s200
      %p204 = pneg %p198
      %p205 = scmp.eq.s32.totalorder %s22, 1
      %p206 = por %p204, %p205
      %p207 = scmp.ne.s32.totalorder %s199, %s202
      %p208 = scmp.eq.s32.totalorder %s22, 0
      %p209 = por %p207, %p208
      %p210 = scmp.ne.s32.totalorder %s199, %s202
      %p211 = scmp.eq.s32.totalorder %s27, 1
      %p212 = por %p210, %p211
      %p213 = scmp.ne.s32.totalorder %s202, %s203
      %p214 = scmp.eq.s32.totalorder %s27, 0
      %p215 = por %p213, %p214
      %p216 = scmp.ne.s32.totalorder %s202, %s203
      %p217 = scmp.eq.s32.totalorder %s28, 1
      %p218 = por %p216, %p217
      %p220 = scmp.ne.s32.totalorder %s203, %s219
      %p221 = scmp.eq.s32.totalorder %s28, 0
      %p222 = por %p220, %p221
      %s223 = ssub.s32 %s22, %s29
      %p224 = scmp.eq.s32.totalorder %s223, 0
      %s226 = sadd.s32 %s225, 1
      %s227 = scalar_select %p224, %s225, %s226
      %p230 = pneg %p224
      %p231 = scmp.eq.s32.totalorder %s22, 1
      %p232 = por %p230, %p231
      %p233 = scmp.ne.s32.totalorder %s225, %s228
      %p234 = scmp.eq.s32.totalorder %s22, 0
      %p235 = por %p233, %p234
      %p236 = scmp.ne.s32.totalorder %s225, %s228
      %p237 = scmp.eq.s32.totalorder %s27, 1
      %p238 = por %p236, %p237
      %p239 = scmp.ne.s32.totalorder %s228, %s229
      %p240 = scmp.eq.s32.totalorder %s27, 0
      %p241 = por %p239, %p240
      %p242 = scmp.ne.s32.totalorder %s228, %s229
      %p243 = scmp.eq.s32.totalorder %s28, 1
      %p244 = por %p242, %p243
      %p246 = scmp.ne.s32.totalorder %s229, %s245
      %p247 = scmp.eq.s32.totalorder %s28, 0
      %p248 = por %p246, %p247
      %s249 = ssub.s32 %s22, %s29
      %p250 = scmp.eq.s32.totalorder %s249, 0
      %s252 = sadd.s32 %s251, 1
      %s253 = scalar_select %p250, %s251, %s252
      %p256 = pneg %p250
      %p257 = scmp.eq.s32.totalorder %s22, 1
      %p258 = por %p256, %p257
      %p259 = scmp.ne.s32.totalorder %s251, %s254
      %p260 = scmp.eq.s32.totalorder %s22, 0
      %p261 = por %p259, %p260
      %p262 = scmp.ne.s32.totalorder %s251, %s254
      %p263 = scmp.eq.s32.totalorder %s27, 1
      %p264 = por %p262, %p263
      %p265 = scmp.ne.s32.totalorder %s254, %s255
      %p266 = scmp.eq.s32.totalorder %s27, 0
      %p267 = por %p265, %p266
      %p268 = scmp.ne.s32.totalorder %s254, %s255
      %p269 = scmp.eq.s32.totalorder %s28, 1
      %p270 = por %p268, %p269
      %p272 = scmp.ne.s32.totalorder %s255, %s271
      %p273 = scmp.eq.s32.totalorder %s28, 0
      %p274 = por %p272, %p273
      %s275 = ssub.s32 %s22, %s29
      %p276 = scmp.eq.s32.totalorder %s275, 0
      %s278 = sadd.s32 %s277, 1
      %s279 = scalar_select %p276, %s277, %s278
      %p282 = pneg %p276
      %p283 = scmp.eq.s32.totalorder %s22, 1
      %p284 = por %p282, %p283
      %p285 = scmp.ne.s32.totalorder %s277, %s280
      %p286 = scmp.eq.s32.totalorder %s22, 0
      %p287 = por %p285, %p286
      %p288 = scmp.ne.s32.totalorder %s277, %s280
      %p289 = scmp.eq.s32.totalorder %s27, 1
      %p290 = por %p288, %p289
      %p291 = scmp.ne.s32.totalorder %s280, %s281
      %p292 = scmp.eq.s32.totalorder %s27, 0
      %p293 = por %p291, %p292
      %p294 = scmp.ne.s32.totalorder %s280, %s281
      %p295 = scmp.eq.s32.totalorder %s28, 1
      %p296 = por %p294, %p295
      %p298 = scmp.ne.s32.totalorder %s281, %s297
      %p299 = scmp.eq.s32.totalorder %s28, 0
      %p300 = por %p298, %p299
      %s301 = ssub.s32 %s22, %s29
      %p302 = scmp.eq.s32.totalorder %s301, 0
      %s304 = sadd.s32 %s303, 1
      %s305 = scalar_select %p302, %s303, %s304
      %p308 = pneg %p302
      %p309 = scmp.eq.s32.totalorder %s22, 1
      %p310 = por %p308, %p309
      %p311 = scmp.ne.s32.totalorder %s303, %s306
      %p312 = scmp.eq.s32.totalorder %s22, 0
      %p313 = por %p311, %p312
      %p314 = scmp.ne.s32.totalorder %s303, %s306
      %p315 = scmp.eq.s32.totalorder %s27, 1
      %p316 = por %p314, %p315
      %p317 = scmp.ne.s32.totalorder %s306, %s307
      %p318 = scmp.eq.s32.totalorder %s27, 0
      %p319 = por %p317, %p318
      %p320 = scmp.ne.s32.totalorder %s306, %s307
      %p321 = scmp.eq.s32.totalorder %s28, 1
      %p322 = por %p320, %p321
      %p324 = scmp.ne.s32.totalorder %s307, %s323
      %p325 = scmp.eq.s32.totalorder %s28, 0
      %p326 = por %p324, %p325
      %s327 = ssub.s32 %s22, %s29
      %p328 = scmp.eq.s32.totalorder %s327, 0
      %s330 = sadd.s32 %s329, 1
      %s331 = scalar_select %p328, %s329, %s330
      %p334 = pneg %p328
      %p335 = scmp.eq.s32.totalorder %s22, 1
      %p336 = por %p334, %p335
      %p337 = scmp.ne.s32.totalorder %s329, %s332
      %p338 = scmp.eq.s32.totalorder %s22, 0
      %p339 = por %p337, %p338
      %p340 = scmp.ne.s32.totalorder %s329, %s332
      %p341 = scmp.eq.s32.totalorder %s27, 1
      %p342 = por %p340, %p341
      %p343 = scmp.ne.s32.totalorder %s332, %s333
      %p344 = scmp.eq.s32.totalorder %s27, 0
      %p345 = por %p343, %p344
      %p346 = scmp.ne.s32.totalorder %s332, %s333
      %p347 = scmp.eq.s32.totalorder %s28, 1
      %p348 = por %p346, %p347
      %p350 = scmp.ne.s32.totalorder %s333, %s349
      %p351 = scmp.eq.s32.totalorder %s28, 0
      %p352 = por %p350, %p351
      %s353 = ssub.s32 %s22, %s29
      %p354 = scmp.eq.s32.totalorder %s353, 0
      %s356 = sadd.s32 %s355, 1
      %s357 = scalar_select %p354, %s355, %s356
      %p360 = pneg %p354
      %p361 = scmp.eq.s32.totalorder %s22, 1
      %p362 = por %p360, %p361
      %p363 = scmp.ne.s32.totalorder %s355, %s358
      %p364 = scmp.eq.s32.totalorder %s22, 0
      %p365 = por %p363, %p364
      %p366 = scmp.ne.s32.totalorder %s355, %s358
      %p367 = scmp.eq.s32.totalorder %s27, 1
      %p368 = por %p366, %p367
      %p369 = scmp.ne.s32.totalorder %s358, %s359
      %p370 = scmp.eq.s32.totalorder %s27, 0
      %p371 = por %p369, %p370
      %p372 = scmp.ne.s32.totalorder %s358, %s359
      %p373 = scmp.eq.s32.totalorder %s28, 1
      %p374 = por %p372, %p373
      %p376 = scmp.ne.s32.totalorder %s359, %s375
      %p377 = scmp.eq.s32.totalorder %s28, 0
      %p378 = por %p376, %p377
      %s379 = ssub.s32 %s22, %s29
      %p380 = scmp.eq.s32.totalorder %s379, 0
      %s382 = sadd.s32 %s381, 1
      %s383 = scalar_select %p380, %s381, %s382
      %p386 = pneg %p380
      %p387 = scmp.eq.s32.totalorder %s22, 1
      %p388 = por %p386, %p387
      %p389 = scmp.ne.s32.totalorder %s381, %s384
      %p390 = scmp.eq.s32.totalorder %s22, 0
      %p391 = por %p389, %p390
      %p392 = scmp.ne.s32.totalorder %s381, %s384
      %p393 = scmp.eq.s32.totalorder %s27, 1
      %p394 = por %p392, %p393
      %p395 = scmp.ne.s32.totalorder %s384, %s385
      %p396 = scmp.eq.s32.totalorder %s27, 0
      %p397 = por %p395, %p396
      %p398 = scmp.ne.s32.totalorder %s384, %s385
      %p399 = scmp.eq.s32.totalorder %s28, 1
      %p400 = por %p398, %p399
      %p402 = scmp.ne.s32.totalorder %s385, %s401
      %p403 = scmp.eq.s32.totalorder %s28, 0
      %p404 = por %p402, %p403
      %s406 = sadd.s32 %s405, 1
      %p409 = scmp.eq.s32.totalorder %s22, 1
      %p410 = scmp.ne.s32.totalorder %s405, %s407
      %p411 = scmp.eq.s32.totalorder %s22, 0
      %p412 = por %p410, %p411
      %p413 = scmp.ne.s32.totalorder %s405, %s407
      %p414 = scmp.eq.s32.totalorder %s27, 1
      %p415 = por %p413, %p414
      %p416 = scmp.ne.s32.totalorder %s407, %s408
      %p417 = scmp.eq.s32.totalorder %s27, 0
      %p418 = por %p416, %p417
      %p419 = scmp.ne.s32.totalorder %s407, %s408
      %p420 = scmp.eq.s32.totalorder %s28, 1
      %p421 = por %p419, %p420
      %p423 = scmp.ne.s32.totalorder %s408, %s422
      %p424 = scmp.eq.s32.totalorder %s28, 0
      %p425 = por %p423, %p424
      %p426 = scmp.le.s32.totalorder 1, %s22
      %p427 = scmp.lt.s32.totalorder %s22, 3
      %p428 = pnand %p426, %p427
      %p429 = pneg %p428
      // Predicated region
      $region9: #{tpu_custom_call.1} parent=5 // pred_check
        _
      $region10: #{tpu_custom_call.1} parent=5 // pred_check_branch
        %431 = sbr.rel (%p428) target = $region12
      $region11: #{tpu_custom_call.1} parent=5 // pred_region
        %s432 = ssub.s32 %s22, 1
        // Predicated region
        $region13: #{tpu_custom_call.1} parent=11 // pred_check
          %p433 = pneg %p43
        $region14: #{tpu_custom_call.1} parent=11 // pred_check_branch
          %435 = sbr.rel (%p433) target = $region16
        $region15: #{tpu_custom_call.1} parent=11 // pred_region
          _
        $region16: #{tpu_custom_call.1} parent=11 // pred_fallthru
          _
        // Predicated region
        $region17: #{tpu_custom_call.1} parent=11 // pred_check
          %p436 = pneg %p64
        $region18: #{tpu_custom_call.1} parent=11 // pred_check_branch
          %438 = sbr.rel (%p436) target = $region20
        $region19: #{tpu_custom_call.1} parent=11 // pred_region
          _
        $region20: #{tpu_custom_call.1} parent=11 // pred_fallthru
          _
        // Predicated region
        $region21: #{tpu_custom_call.1} parent=11 // pred_check
          %p439 = pneg %p85
        $region22: #{tpu_custom_call.1} parent=11 // pred_check_branch
          %441 = sbr.rel (%p439) target = $region24
        $region23: #{tpu_custom_call.1} parent=11 // pred_region
          _
        $region24: #{tpu_custom_call.1} parent=11 // pred_fallthru
          _
      $region12: #{tpu_custom_call.1} parent=5 // pred_fallthru
        _
      %p442 = scmp.lt.s32.totalorder %s22, 2
      // Predicated region
      $region25: #{tpu_custom_call.1} parent=5 // pred_check
        %p443 = pneg %p442
      $region26: #{tpu_custom_call.1} parent=5 // pred_check_branch
        %445 = sbr.rel (%p443) target = $region28
      $region27: #{tpu_custom_call.1} parent=5 // pred_region
        // Predicated region
        $region29: #{tpu_custom_call.1} parent=27 // pred_check
          %p446 = pneg %p105
        $region30: #{tpu_custom_call.1} parent=27 // pred_check_branch
          %448 = sbr.rel (%p446) target = $region32
        $region31: #{tpu_custom_call.1} parent=27 // pred_region
          %p449 = scmp.lt.s32.totalorder %s22, 1
          %s450 = scalar_select %p449, %s22, 1
          %s451 = scalar_lea.vmem %s3, %s450
        $region32: #{tpu_custom_call.1} parent=27 // pred_fallthru
          _
        // Predicated region
        $region33: #{tpu_custom_call.1} parent=27 // pred_check
          %p452 = pneg %p131
        $region34: #{tpu_custom_call.1} parent=27 // pred_check_branch
          %454 = sbr.rel (%p452) target = $region36
        $region35: #{tpu_custom_call.1} parent=27 // pred_region
          %p455 = scmp.lt.s32.totalorder %s22, 1
          %s456 = scalar_select %p455, %s22, 1
          %s457 = scalar_lea.vmem %s4, %s456
        $region36: #{tpu_custom_call.1} parent=27 // pred_fallthru
          _
        // Predicated region
        $region37: #{tpu_custom_call.1} parent=27 // pred_check
          %p458 = pneg %p157
        $region38: #{tpu_custom_call.1} parent=27 // pred_check_branch
          %460 = sbr.rel (%p458) target = $region40
        $region39: #{tpu_custom_call.1} parent=27 // pred_region
          %p461 = scmp.lt.s32.totalorder %s22, 1
          %s462 = scalar_select %p461, %s22, 1
          %s463 = smul.addr %s462, 4
          %s464 = smul.addr %s463, 8
          %s465 = scalar_lea.vmem %s5, %s464
        $region40: #{tpu_custom_call.1} parent=27 // pred_fallthru
          _
        // Predicated region
        $region41: #{tpu_custom_call.1} parent=27 // pred_check
          %p466 = pneg %p183
        $region42: #{tpu_custom_call.1} parent=27 // pred_check_branch
          %468 = sbr.rel (%p466) target = $region44
        $region43: #{tpu_custom_call.1} parent=27 // pred_region
          %p469 = scmp.lt.s32.totalorder %s22, 1
          %s470 = scalar_select %p469, %s22, 1
          %s471 = scalar_lea.vmem %s6, %s470
        $region44: #{tpu_custom_call.1} parent=27 // pred_fallthru
          _
        // Predicated region
        $region45: #{tpu_custom_call.1} parent=27 // pred_check
          %p472 = pneg %p209
        $region46: #{tpu_custom_call.1} parent=27 // pred_check_branch
          %474 = sbr.rel (%p472) target = $region48
        $region47: #{tpu_custom_call.1} parent=27 // pred_region
          %p475 = scmp.lt.s32.totalorder %s22, 1
          %s476 = scalar_select %p475, %s22, 1
          %s477 = smul.addr %s476, 2
          %s478 = smul.addr %s477, 8
          %s479 = scalar_lea.vmem %s7, %s478
        $region48: #{tpu_custom_call.1} parent=27 // pred_fallthru
          _
        // Predicated region
        $region49: #{tpu_custom_call.1} parent=27 // pred_check
          %p480 = pneg %p235
        $region50: #{tpu_custom_call.1} parent=27 // pred_check_branch
          %482 = sbr.rel (%p480) target = $region52
        $region51: #{tpu_custom_call.1} parent=27 // pred_region
          %p483 = scmp.lt.s32.totalorder %s22, 1
          %s484 = scalar_select %p483, %s22, 1
          %s485 = scalar_lea.vmem %s8, %s484
        $region52: #{tpu_custom_call.1} parent=27 // pred_fallthru
          _
        // Predicated region
        $region53: #{tpu_custom_call.1} parent=27 // pred_check
          %p486 = pneg %p261
        $region54: #{tpu_custom_call.1} parent=27 // pred_check_branch
          %488 = sbr.rel (%p486) target = $region56
        $region55: #{tpu_custom_call.1} parent=27 // pred_region
          %p489 = scmp.lt.s32.totalorder %s22, 1
          %s490 = scalar_select %p489, %s22, 1
          %s491 = scalar_lea.vmem %s9, %s490
        $region56: #{tpu_custom_call.1} parent=27 // pred_fallthru
          _
        // Predicated region
        $region57: #{tpu_custom_call.1} parent=27 // pred_check
          %p492 = pneg %p287
        $region58: #{tpu_custom_call.1} parent=27 // pred_check_branch
          %494 = sbr.rel (%p492) target = $region60
        $region59: #{tpu_custom_call.1} parent=27 // pred_region
          %p495 = scmp.lt.s32.totalorder %s22, 1
          %s496 = scalar_select %p495, %s22, 1
          %s497 = scalar_lea.vmem %s10, %s496
        $region60: #{tpu_custom_call.1} parent=27 // pred_fallthru
          _
        // Predicated region
        $region61: #{tpu_custom_call.1} parent=27 // pred_check
          %p498 = pneg %p313
        $region62: #{tpu_custom_call.1} parent=27 // pred_check_branch
          %500 = sbr.rel (%p498) target = $region64
        $region63: #{tpu_custom_call.1} parent=27 // pred_region
          %p501 = scmp.lt.s32.totalorder %s22, 1
          %s502 = scalar_select %p501, %s22, 1
          %s503 = smul.addr %s502, 4
          %s504 = smul.addr %s503, 8
          %s505 = scalar_lea.vmem %s11, %s504
        $region64: #{tpu_custom_call.1} parent=27 // pred_fallthru
          _
        // Predicated region
        $region65: #{tpu_custom_call.1} parent=27 // pred_check
          %p506 = pneg %p339
        $region66: #{tpu_custom_call.1} parent=27 // pred_check_branch
          %508 = sbr.rel (%p506) target = $region68
        $region67: #{tpu_custom_call.1} parent=27 // pred_region
          %p509 = scmp.lt.s32.totalorder %s22, 1
          %s510 = scalar_select %p509, %s22, 1
          %s511 = scalar_lea.vmem %s12, %s510
        $region68: #{tpu_custom_call.1} parent=27 // pred_fallthru
          _
        // Predicated region
        $region69: #{tpu_custom_call.1} parent=27 // pred_check
          %p512 = pneg %p365
        $region70: #{tpu_custom_call.1} parent=27 // pred_check_branch
          %514 = sbr.rel (%p512) target = $region72
        $region71: #{tpu_custom_call.1} parent=27 // pred_region
          %p515 = scmp.lt.s32.totalorder %s22, 1
          %s516 = scalar_select %p515, %s22, 1
          %s517 = smul.addr %s516, 16
          %s518 = smul.addr %s517, 8
          %s519 = scalar_lea.vmem %s13, %s518
        $region72: #{tpu_custom_call.1} parent=27 // pred_fallthru
          _
        // Predicated region
        $region73: #{tpu_custom_call.1} parent=27 // pred_check
          %p520 = pneg %p391
        $region74: #{tpu_custom_call.1} parent=27 // pred_check_branch
          %522 = sbr.rel (%p520) target = $region76
        $region75: #{tpu_custom_call.1} parent=27 // pred_region
          %p523 = scmp.lt.s32.totalorder %s22, 1
          %s524 = scalar_select %p523, %s22, 1
          %s525 = scalar_lea.vmem %s14, %s524
        $region76: #{tpu_custom_call.1} parent=27 // pred_fallthru
          _
      $region28: #{tpu_custom_call.1} parent=5 // pred_fallthru
        _
      %p526 = scmp.le.s32.totalorder 1, %s22
      %p527 = scmp.lt.s32.totalorder %s22, 3
      %p528 = pnand %p526, %p527
      %p529 = pneg %p528
      // Predicated region
      $region77: #{tpu_custom_call.1} parent=5 // pred_check
        _
      $region78: #{tpu_custom_call.1} parent=5 // pred_check_branch
        %531 = sbr.rel (%p528) target = $region80
      $region79: #{tpu_custom_call.1} parent=5 // pred_region
        %s532 = ssub.s32 %s22, 1
        %p533 = pneg %p43
        %p534 = pneg %p40
        %p535 = pneg %p64
        %p536 = pneg %p61
        %p537 = pneg %p85
        %p538 = pneg %p82
        %p539 = scmp.lt.s32.totalorder %s27, 1
        %s540 = scalar_select %p539, %s27, 1
        %s541 = scalar_lea.vmem %s3, %s540
        %p542 = pneg %p111
        %p543 = pneg %p108
        %p544 = scmp.lt.s32.totalorder %s27, 1
        %s545 = scalar_select %p544, %s27, 1
        %s546 = scalar_lea.vmem %s4, %s545
        %p547 = pneg %p137
        %p548 = pneg %p134
        %p549 = scmp.lt.s32.totalorder %s27, 1
        %s550 = scalar_select %p549, %s27, 1
        %s551 = smul.addr %s550, 4
        %s552 = smul.addr %s551, 8
        %s553 = scalar_lea.vmem %s5, %s552
        %p554 = pneg %p163
        %p555 = pneg %p160
        %p556 = scmp.lt.s32.totalorder %s27, 1
        %s557 = scalar_select %p556, %s27, 1
        %s558 = scalar_lea.vmem %s6, %s557
        %p559 = pneg %p189
        %p560 = pneg %p186
        %p561 = scmp.lt.s32.totalorder %s27, 1
        %s562 = scalar_select %p561, %s27, 1
        %s563 = smul.addr %s562, 2
        %s564 = smul.addr %s563, 8
        %s565 = scalar_lea.vmem %s7, %s564
        %p566 = pneg %p215
        %p567 = pneg %p212
        %p568 = scmp.lt.s32.totalorder %s27, 1
        %s569 = scalar_select %p568, %s27, 1
        %s570 = scalar_lea.vmem %s8, %s569
        %p571 = pneg %p241
        %p572 = pneg %p238
        %p573 = scmp.lt.s32.totalorder %s27, 1
        %s574 = scalar_select %p573, %s27, 1
        %s575 = scalar_lea.vmem %s9, %s574
        %p576 = pneg %p267
        %p577 = pneg %p264
        %p578 = scmp.lt.s32.totalorder %s27, 1
        %s579 = scalar_select %p578, %s27, 1
        %s580 = scalar_lea.vmem %s10, %s579
        %p581 = pneg %p293
        %p582 = pneg %p290
        %p583 = scmp.lt.s32.totalorder %s27, 1
        %s584 = scalar_select %p583, %s27, 1
        %s585 = smul.addr %s584, 4
        %s586 = smul.addr %s585, 8
        %s587 = scalar_lea.vmem %s11, %s586
        %p588 = pneg %p319
        %p589 = pneg %p316
        %p590 = scmp.lt.s32.totalorder %s27, 1
        %s591 = scalar_select %p590, %s27, 1
        %s592 = scalar_lea.vmem %s12, %s591
        %p593 = pneg %p345
        %p594 = pneg %p342
        %p595 = scmp.lt.s32.totalorder %s27, 1
        %s596 = scalar_select %p595, %s27, 1
        %s597 = smul.addr %s596, 16
        %s598 = smul.addr %s597, 8
        %s599 = scalar_lea.vmem %s13, %s598
        %p600 = pneg %p371
        %p601 = pneg %p368
        %p602 = scmp.lt.s32.totalorder %s27, 1
        %s603 = scalar_select %p602, %s27, 1
        %s604 = scalar_lea.vmem %s14, %s603
        %p605 = pneg %p397
        %p606 = pneg %p394
        %p607 = pneg %p418
        %p608 = pneg %p415
        %p609 = scmp.lt.s32.totalorder %s27, 1
        %s610 = scalar_select %p609, %s27, 1
        %s611 = scalar_lea.vmem %s3, %s610
        %p612 = scmp.lt.s32.totalorder %s27, 1
        %s613 = scalar_select %p612, %s27, 1
        %s614 = scalar_lea.vmem %s4, %s613
        %p615 = scmp.lt.s32.totalorder %s27, 1
        %s616 = scalar_select %p615, %s27, 1
        %s617 = smul.addr %s616, 4
        %s618 = smul.addr %s617, 8
        %s619 = scalar_lea.vmem %s5, %s618
        %p620 = scmp.lt.s32.totalorder %s27, 1
        %s621 = scalar_select %p620, %s27, 1
        %s622 = scalar_lea.vmem %s6, %s621
        %p623 = scmp.lt.s32.totalorder %s27, 1
        %s624 = scalar_select %p623, %s27, 1
        %s625 = smul.addr %s624, 2
        %s626 = smul.addr %s625, 8
        %s627 = scalar_lea.vmem %s7, %s626
        %p628 = scmp.lt.s32.totalorder %s27, 1
        %s629 = scalar_select %p628, %s27, 1
        %s630 = scalar_lea.vmem %s8, %s629
        %p631 = scmp.lt.s32.totalorder %s27, 1
        %s632 = scalar_select %p631, %s27, 1
        %s633 = scalar_lea.vmem %s9, %s632
        %p634 = scmp.lt.s32.totalorder %s27, 1
        %s635 = scalar_select %p634, %s27, 1
        %s636 = scalar_lea.vmem %s10, %s635
        %p637 = scmp.lt.s32.totalorder %s27, 1
        %s638 = scalar_select %p637, %s27, 1
        %s639 = smul.addr %s638, 4
        %s640 = smul.addr %s639, 8
        %s641 = scalar_lea.vmem %s11, %s640
        %p642 = scmp.lt.s32.totalorder %s27, 1
        %s643 = scalar_select %p642, %s27, 1
        %s644 = scalar_lea.vmem %s12, %s643
        %p645 = scmp.lt.s32.totalorder %s27, 1
        %s646 = scalar_select %p645, %s27, 1
        %s647 = smul.addr %s646, 16
        %s648 = smul.addr %s647, 8
        %s649 = scalar_lea.vmem %s13, %s648
        %p650 = scmp.lt.s32.totalorder %s27, 1
        %s651 = scalar_select %p650, %s27, 1
        %s652 = scalar_lea.vmem %s14, %s651
        %p653 = scmp.eq.s32.totalorder %s27, 0
        // Predicated region
        $region81: #{tpu_custom_call.1} parent=79 // pred_check
          %p654 = pneg %p653
        $region82: #{tpu_custom_call.1} parent=79 // pred_check_branch
          %656 = sbr.rel (%p654) target = $region84
        $region83: #{tpu_custom_call.1} parent=79 // pred_region
          %v657 = vld [vmem:[%s0] sm:$0xff]
          %v658 = vld [vmem:[%s0 + $0x8] sm:$0xff]
          %v659 = vld [vmem:[%s0 + $0x10] sm:$0xff]
          %v660 = vld [vmem:[%s0 + $0x18] sm:$0xff]
          %v661 = vld [vmem:[%s1] sm:$0xff]
          %v662 = vld [vmem:[%s1 + $0x8] sm:$0xff]
          %v663 = vadd.f32 %v657, %v661
          %v664 = vadd.f32 %v658, %v662
          %v665 = vadd.f32 %v659, %v661
          %v666 = vadd.f32 %v660, %v662
          %vm667 = vcmask 261120
          %668 = vst.msk [vmem:[#allocation2] sm:$0xff] %vm667, %v663
          %669 = vst.msk [vmem:[#allocation2 + $0x8] sm:$0xff] %vm667, %v664
          %670 = vst.msk [vmem:[#allocation2 + $0x10] sm:$0xff] %vm667, %v665
          %671 = vst.msk [vmem:[#allocation2 + $0x18] sm:$0xff] %vm667, %v666
        $region84: #{tpu_custom_call.1} parent=79 // pred_fallthru
          _
        %v672 = vld [vmem:[#allocation2] sm:$0xff]
        %v673 = vld [vmem:[#allocation2 + $0x8] sm:$0xff]
        %v674 = vld [vmem:[#allocation2 + $0x10] sm:$0xff]
        %v675 = vld [vmem:[#allocation2 + $0x18] sm:$0xff]
        %vm676 = vcmask 261120
        %v677 = vsel %vm676, %v672, 0.0
        %678 = vadd.xlane.f32.xlu0 %v677
        %v679 = vpop.xlane.xlu0 %678
        %v680 = vsel %vm676, %v673, 0.0
        %681 = vadd.xlane.f32.xlu0 %v680
        %v682 = vpop.xlane.xlu0 %681
        %v683 = vsel %vm676, %v674, 0.0
        %684 = vadd.xlane.f32.xlu0 %v683
        %v685 = vpop.xlane.xlu0 %684
        %v686 = vsel %vm676, %v675, 0.0
        %687 = vadd.xlane.f32.xlu0 %v686
        %v688 = vpop.xlane.xlu0 %687
        %v689 = vrcp.pop 32.0
        %v690 = vmul.f32 32.0, %v689
        %v691 = vsub.f32 1.0, %v690
        %v692 = vmul.f32 %v689, %v691
        %v693 = vadd.f32 %v689, %v692
        %vm694 = vweird.f32 %v689
        %v695 = vsel %vm694, %v689, %v693
        %v696 = vmul.f32 %v679, %v695
        %v697 = vmul.f32 %v682, %v695
        %v698 = vmul.f32 %v685, %v695
        %v699 = vmul.f32 %v688, %v695
        %v700 = vsub.f32 %v672, %v696
        %v701 = vsub.f32 %v673, %v697
        %v702 = vsub.f32 %v674, %v698
        %v703 = vsub.f32 %v675, %v699
        %v704 = vmul.f32 %v700, %v700
        %v705 = vmul.f32 %v701, %v701
        %v706 = vmul.f32 %v702, %v702
        %v707 = vmul.f32 %v703, %v703
        %v708 = vsel %vm676, %v704, 0.0
        %709 = vadd.xlane.f32.xlu0 %v708
        %v710 = vpop.xlane.xlu0 %709
        %v711 = vsel %vm676, %v705, 0.0
        %712 = vadd.xlane.f32.xlu0 %v711
        %v713 = vpop.xlane.xlu0 %712
        %v714 = vsel %vm676, %v706, 0.0
        %715 = vadd.xlane.f32.xlu0 %v714
        %v716 = vpop.xlane.xlu0 %715
        %v717 = vsel %vm676, %v707, 0.0
        %718 = vadd.xlane.f32.xlu0 %v717
        %v719 = vpop.xlane.xlu0 %718
        %v720 = vmul.f32 %v710, %v695
        %v721 = vmul.f32 %v713, %v695
        %v722 = vmul.f32 %v716, %v695
        %v723 = vmul.f32 %v719, %v695
        %v724 = vadd.f32 %v720, 1e-05
        %v725 = vadd.f32 %v721, 1e-05
        %v726 = vadd.f32 %v722, 1e-05
        %v727 = vadd.f32 %v723, 1e-05
        %v728 = vrsqrt.pop %v724
        %v729 = vmul.f32 %v728, %v724
        %v730 = vmul.f32 %v729, %v728
        %v731 = vmul.f32 0.5, %v730
        %v732 = vsub.f32 1.5, %v731
        %v733 = vmul.f32 %v728, %v732
        %vm734 = vweird.f32 %v724
        %vm735 = vweird.f32 %v728
        %vm736 = vmor %vm734, %vm735
        %v737 = vsel %vm736, %v728, %v733
        %v738 = vrsqrt.pop %v725
        %v739 = vmul.f32 %v738, %v725
        %v740 = vmul.f32 %v739, %v738
        %v741 = vmul.f32 0.5, %v740
        %v742 = vsub.f32 1.5, %v741
        %v743 = vmul.f32 %v738, %v742
        %vm744 = vweird.f32 %v725
        %vm745 = vweird.f32 %v738
        %vm746 = vmor %vm744, %vm745
        %v747 = vsel %vm746, %v738, %v743
        %v748 = vrsqrt.pop %v726
        %v749 = vmul.f32 %v748, %v726
        %v750 = vmul.f32 %v749, %v748
        %v751 = vmul.f32 0.5, %v750
        %v752 = vsub.f32 1.5, %v751
        %v753 = vmul.f32 %v748, %v752
        %vm754 = vweird.f32 %v726
        %vm755 = vweird.f32 %v748
        %vm756 = vmor %vm754, %vm755
        %v757 = vsel %vm756, %v748, %v753
        %v758 = vrsqrt.pop %v727
        %v759 = vmul.f32 %v758, %v727
        %v760 = vmul.f32 %v759, %v758
        %v761 = vmul.f32 0.5, %v760
        %v762 = vsub.f32 1.5, %v761
        %v763 = vmul.f32 %v758, %v762
        %vm764 = vweird.f32 %v727
        %vm765 = vweird.f32 %v758
        %vm766 = vmor %vm764, %vm765
        %v767 = vsel %vm766, %v758, %v763
        %v768 = vmul.f32 %v700, %v737
        %v769 = vmul.f32 %v701, %v747
        %v770 = vmul.f32 %v702, %v757
        %v771 = vmul.f32 %v703, %v767
        %v772 = vld [vmem:[%s611] sm:$0x1]
        %v774 = vperm.slane %v772, 0
        %v776 = vmul.f32 %v768, %v774
        %v777 = vmul.f32 %v769, %v774
        %v778 = vmul.f32 %v770, %v774
        %v779 = vmul.f32 %v771, %v774
        %v780 = vld [vmem:[%s614] sm:$0x1]
        %v782 = vperm.slane %v780, 0
        %v784 = vadd.f32 %v776, %v782
        %v785 = vadd.f32 %v777, %v782
        %v786 = vadd.f32 %v778, %v782
        %v787 = vadd.f32 %v779, %v782
        %v788 = vld [vmem:[%s619] sm:$0xff]
        %v789 = vld [vmem:[%s619 + $0x8] sm:$0xff]
        %v790 = vld [vmem:[%s619 + $0x10] sm:$0xff]
        %v791 = vld [vmem:[%s619 + $0x18] sm:$0xff]
        %v792 = vld [vmem:[%s622] sm:$0x1]
        %v794 = vperm.slane %v792, 0
        %v797 = vsel %vm676, %v784, 0
        %v800 = vsel %vm676, %v785, 0
        %v803 = vsel %vm676, %v786, 0
        %v806 = vsel %vm676, %v787, 0
        %808 = vmatpush.msra.mxu0 0.0
        %809 = vmatpush.msra.mxu0 0.0
        %810 = vmatpush.msra.mxu0 0.0
        %811 = vmatpush.msra.mxu0 0.0
        %812 = vmatpush.msra.mxu0 0.0
        %813 = vmatpush.msra.mxu0 0.0
        %814 = vmatpush.msra.mxu0 0.0
        %815 = vmatpush.msra.mxu0 0.0
        %816 = vmatpush.msra.mxu0 0.0
        %817 = vmatpush.msra.mxu0 0.0
        %818 = vmatpush.msra.mxu0 0.0
        %819 = vmatpush.msra.mxu0 0.0
        %820 = vmatpush.msra.mxu0 %v791
        %821 = vmatpush.msra.mxu0 %v790
        %822 = vmatpush.msra.mxu0 %v789
        %823 = vmatpush.msra.mxu0 %v788
        %824 = vmatmul.f32.gmra.mxu0 %v797
        %v825 = vpop.f32.mrf.mxu0
        %v826 = vadd.f32 %v794, %v825
        %827 = vmatmul.f32.gmra.mxu0 %v800
        %v828 = vpop.f32.mrf.mxu0
        %v829 = vadd.f32 %v794, %v828
        %830 = vmatmul.f32.gmra.mxu0 %v803
        %v831 = vpop.f32.mrf.mxu0
        %v832 = vadd.f32 %v794, %v831
        %833 = vmatmul.f32.gmra.mxu0 %v806
        %v834 = vpop.f32.mrf.mxu0
        %v835 = vadd.f32 %v794, %v834
        %836 = vdwg.mxu0
        %v837 = vld [vmem:[%s2] sm:$0xff]
        %v838 = vld [vmem:[%s2 + $0x8] sm:$0xff]
        %841 = vrot.lane.b32.xlu0 %v826, 112
        %v842 = vpop.permute.xlu0 %841
        %843 = vrot.lane.b32.xlu0 %v829, 112
        %v844 = vpop.permute.xlu0 %843
        %vm845 = vcmask 64512
        %v846 = vsel %vm845, %v826, 0
        %v848 = vsel %vm845, %v829, 0
        %v850 = vsel %vm845, %v842, 0
        %v852 = vsel %vm845, %v844, 0
        %854 = vmatpush.xpose.msra.mxu0 0.0
        %855 = vmatpush.xpose.msra.mxu0 0.0
        %856 = vmatpush.xpose.msra.mxu0 0.0
        %857 = vmatpush.xpose.msra.mxu0 0.0
        %858 = vmatpush.xpose.msra.mxu0 0.0
        %859 = vmatpush.xpose.msra.mxu0 0.0
        %860 = vmatpush.xpose.msra.mxu0 0.0
        %861 = vmatpush.xpose.msra.mxu0 0.0
        %862 = vmatpush.xpose.msra.mxu0 0.0
        %863 = vmatpush.xpose.msra.mxu0 0.0
        %864 = vmatpush.xpose.msra.mxu0 0.0
        %865 = vmatpush.xpose.msra.mxu0 0.0
        %866 = vmatpush.xpose.msra.mxu0 0.0
        %867 = vmatpush.xpose.msra.mxu0 0.0
        %868 = vmatpush.xpose.msra.mxu0 %v852
        %869 = vmatpush.xpose.msra.mxu0 %v850
        %870 = vmatmul.f32.gmra.mxu0 %v846
        %v871 = vpop.f32.mrf.mxu0
        %v872 = vadd.f32 0.0, %v871
        %873 = vmatmul.f32.gmra.mxu0 %v848
        %v874 = vpop.f32.mrf.mxu0
        %v875 = vadd.f32 0.0, %v874
        %876 = vdwg.mxu0
        %879 = vrot.lane.b32.xlu0 %v832, 112
        %v880 = vpop.permute.xlu0 %879
        %881 = vrot.lane.b32.xlu0 %v835, 112
        %v882 = vpop.permute.xlu0 %881
        %v883 = vsel %vm845, %v832, 0
        %v885 = vsel %vm845, %v835, 0
        %v887 = vsel %vm845, %v880, 0
        %v889 = vsel %vm845, %v882, 0
        %891 = vmatpush.xpose.msra.mxu0 0.0
        %892 = vmatpush.xpose.msra.mxu0 0.0
        %893 = vmatpush.xpose.msra.mxu0 0.0
        %894 = vmatpush.xpose.msra.mxu0 0.0
        %895 = vmatpush.xpose.msra.mxu0 0.0
        %896 = vmatpush.xpose.msra.mxu0 0.0
        %897 = vmatpush.xpose.msra.mxu0 0.0
        %898 = vmatpush.xpose.msra.mxu0 0.0
        %899 = vmatpush.xpose.msra.mxu0 0.0
        %900 = vmatpush.xpose.msra.mxu0 0.0
        %901 = vmatpush.xpose.msra.mxu0 0.0
        %902 = vmatpush.xpose.msra.mxu0 0.0
        %903 = vmatpush.xpose.msra.mxu0 0.0
        %904 = vmatpush.xpose.msra.mxu0 0.0
        %905 = vmatpush.xpose.msra.mxu0 %v889
        %906 = vmatpush.xpose.msra.mxu0 %v887
        %907 = vmatmul.f32.gmra.mxu0 %v883
        %v908 = vpop.f32.mrf.mxu0
        %v909 = vadd.f32 0.0, %v908
        %910 = vmatmul.f32.gmra.mxu0 %v885
        %v911 = vpop.f32.mrf.mxu0
        %v912 = vadd.f32 0.0, %v911
        %913 = vdwg.mxu0
        %v914 = vmul.f32 %v872, 0.35355338
        %v915 = vmul.f32 %v875, 0.35355338
        %v916 = vmul.f32 %v909, 0.35355338
        %v917 = vmul.f32 %v912, 0.35355338
        %v918 = vadd.f32 %v914, %v837
        %v919 = vadd.f32 %v915, %v838
        %v920 = vadd.f32 %v916, %v837
        %v921 = vadd.f32 %v917, %v838
        %vm922 = vcmask 130048
        %v923 = vsel %vm922, %v918, -inf
        %924 = vmax.xlane.f32.xlu0 %v923
        %v925 = vpop.xlane.xlu0 %924
        %v926 = vsel %vm922, %v919, -inf
        %927 = vmax.xlane.f32.xlu0 %v926
        %v928 = vpop.xlane.xlu0 %927
        %v929 = vsel %vm922, %v920, -inf
        %930 = vmax.xlane.f32.xlu0 %v929
        %v931 = vpop.xlane.xlu0 %930
        %v932 = vsel %vm922, %v921, -inf
        %933 = vmax.xlane.f32.xlu0 %v932
        %v934 = vpop.xlane.xlu0 %933
        %v935 = vsub.f32 %v918, %v925
        %v936 = vsub.f32 %v919, %v928
        %v937 = vsub.f32 %v920, %v931
        %v938 = vsub.f32 %v921, %v934
        %v939 = vmul.f32 %v935, 1.442695
        %v940 = vpow.pop %v939
        %v941 = vmul.f32 %v936, 1.442695
        %v942 = vpow.pop %v941
        %v943 = vmul.f32 %v937, 1.442695
        %v944 = vpow.pop %v943
        %v945 = vmul.f32 %v938, 1.442695
        %v946 = vpow.pop %v945
        %v947 = vsel %vm922, %v940, 0.0
        %948 = vadd.xlane.f32.xlu0 %v947
        %v949 = vpop.xlane.xlu0 %948
        %v950 = vsel %vm922, %v942, 0.0
        %951 = vadd.xlane.f32.xlu0 %v950
        %v952 = vpop.xlane.xlu0 %951
        %v953 = vsel %vm922, %v944, 0.0
        %954 = vadd.xlane.f32.xlu0 %v953
        %v955 = vpop.xlane.xlu0 %954
        %v956 = vsel %vm922, %v946, 0.0
        %957 = vadd.xlane.f32.xlu0 %v956
        %v958 = vpop.xlane.xlu0 %957
        %v959 = vrcp.pop %v949
        %v960 = vrcp.pop %v952
        %v961 = vrcp.pop %v955
        %v962 = vrcp.pop %v958
        %v963 = vmul.f32 %v940, %v959
        %v964 = vmul.f32 %v942, %v960
        %v965 = vmul.f32 %v944, %v961
        %v966 = vmul.f32 %v946, %v962
        %967 = vrot.lane.b32.xlu0 %v826, 96
        %v968 = vpop.permute.xlu0 %967
        %969 = vrot.lane.b32.xlu0 %v829, 96
        %v970 = vpop.permute.xlu0 %969
        %v974 = vsel %vm922, %v963, 0
        %v977 = vsel %vm922, %v964, 0
        %979 = vmatpush.msra.mxu0 0.0
        %980 = vmatpush.msra.mxu0 0.0
        %981 = vmatpush.msra.mxu0 0.0
        %982 = vmatpush.msra.mxu0 0.0
        %983 = vmatpush.msra.mxu0 0.0
        %984 = vmatpush.msra.mxu0 0.0
        %985 = vmatpush.msra.mxu0 0.0
        %986 = vmatpush.msra.mxu0 0.0
        %987 = vmatpush.msra.mxu0 0.0
        %988 = vmatpush.msra.mxu0 0.0
        %989 = vmatpush.msra.mxu0 0.0
        %990 = vmatpush.msra.mxu0 0.0
        %991 = vmatpush.msra.mxu0 0.0
        %992 = vmatpush.msra.mxu0 0.0
        %993 = vmatpush.msra.mxu0 %v970
        %994 = vmatpush.msra.mxu0 %v968
        %995 = vmatmul.f32.gmra.mxu0 %v974
        %v996 = vpop.f32.mrf.mxu0
        %v997 = vadd.f32 0.0, %v996
        %998 = vmatmul.f32.gmra.mxu0 %v977
        %v999 = vpop.f32.mrf.mxu0
        %v1000 = vadd.f32 0.0, %v999
        %1001 = vdwg.mxu0
        %1002 = vrot.lane.b32.xlu0 %v832, 96
        %v1003 = vpop.permute.xlu0 %1002
        %1004 = vrot.lane.b32.xlu0 %v835, 96
        %v1005 = vpop.permute.xlu0 %1004
        %v1009 = vsel %vm922, %v965, 0
        %v1012 = vsel %vm922, %v966, 0
        %1014 = vmatpush.msra.mxu0 0.0
        %1015 = vmatpush.msra.mxu0 0.0
        %1016 = vmatpush.msra.mxu0 0.0
        %1017 = vmatpush.msra.mxu0 0.0
        %1018 = vmatpush.msra.mxu0 0.0
        %1019 = vmatpush.msra.mxu0 0.0
        %1020 = vmatpush.msra.mxu0 0.0
        %1021 = vmatpush.msra.mxu0 0.0
        %1022 = vmatpush.msra.mxu0 0.0
        %1023 = vmatpush.msra.mxu0 0.0
        %1024 = vmatpush.msra.mxu0 0.0
        %1025 = vmatpush.msra.mxu0 0.0
        %1026 = vmatpush.msra.mxu0 0.0
        %1027 = vmatpush.msra.mxu0 0.0
        %1028 = vmatpush.msra.mxu0 %v1005
        %1029 = vmatpush.msra.mxu0 %v1003
        %1030 = vmatmul.f32.gmra.mxu0 %v1009
        %v1031 = vpop.f32.mrf.mxu0
        %v1032 = vadd.f32 0.0, %v1031
        %1033 = vmatmul.f32.gmra.mxu0 %v1012
        %v1034 = vpop.f32.mrf.mxu0
        %v1035 = vadd.f32 0.0, %v1034
        %1036 = vdwg.mxu0
        %v1037 = vld [vmem:[%s627] sm:$0xff]
        %1038 = vrot.lane.b32.xlu0 %v826, 120
        %v1039 = vpop.permute.xlu0 %1038
        %1040 = vrot.lane.b32.xlu0 %v829, 120
        %v1041 = vpop.permute.xlu0 %1040
        %1042 = vrot.lane.b32.xlu0 %v826, 104
        %v1043 = vpop.permute.xlu0 %1042
        %1044 = vrot.lane.b32.xlu0 %v829, 104
        %v1045 = vpop.permute.xlu0 %1044
        %v1046 = vsel %vm845, %v1039, 0
        %v1048 = vsel %vm845, %v1041, 0
        %v1050 = vsel %vm845, %v1043, 0
        %v1052 = vsel %vm845, %v1045, 0
        %1054 = vmatpush.xpose.msra.mxu0 0.0
        %1055 = vmatpush.xpose.msra.mxu0 0.0
        %1056 = vmatpush.xpose.msra.mxu0 0.0
        %1057 = vmatpush.xpose.msra.mxu0 0.0
        %1058 = vmatpush.xpose.msra.mxu0 0.0
        %1059 = vmatpush.xpose.msra.mxu0 0.0
        %1060 = vmatpush.xpose.msra.mxu0 0.0
        %1061 = vmatpush.xpose.msra.mxu0 0.0
        %1062 = vmatpush.xpose.msra.mxu0 0.0
        %1063 = vmatpush.xpose.msra.mxu0 0.0
        %1064 = vmatpush.xpose.msra.mxu0 0.0
        %1065 = vmatpush.xpose.msra.mxu0 0.0
        %1066 = vmatpush.xpose.msra.mxu0 0.0
        %1067 = vmatpush.xpose.msra.mxu0 0.0
        %1068 = vmatpush.xpose.msra.mxu0 %v1052
        %1069 = vmatpush.xpose.msra.mxu0 %v1050
        %1070 = vmatmul.f32.gmra.mxu0 %v1046
        %v1071 = vpop.f32.mrf.mxu0
        %v1072 = vadd.f32 0.0, %v1071
        %1073 = vmatmul.f32.gmra.mxu0 %v1048
        %v1074 = vpop.f32.mrf.mxu0
        %v1075 = vadd.f32 0.0, %v1074
        %1076 = vdwg.mxu0
        %1077 = vrot.lane.b32.xlu0 %v832, 120
        %v1078 = vpop.permute.xlu0 %1077
        %1079 = vrot.lane.b32.xlu0 %v835, 120
        %v1080 = vpop.permute.xlu0 %1079
        %1081 = vrot.lane.b32.xlu0 %v832, 104
        %v1082 = vpop.permute.xlu0 %1081
        %1083 = vrot.lane.b32.xlu0 %v835, 104
        %v1084 = vpop.permute.xlu0 %1083
        %v1085 = vsel %vm845, %v1078, 0
        %v1087 = vsel %vm845, %v1080, 0
        %v1089 = vsel %vm845, %v1082, 0
        %v1091 = vsel %vm845, %v1084, 0
        %1093 = vmatpush.xpose.msra.mxu0 0.0
        %1094 = vmatpush.xpose.msra.mxu0 0.0
        %1095 = vmatpush.xpose.msra.mxu0 0.0
        %1096 = vmatpush.xpose.msra.mxu0 0.0
        %1097 = vmatpush.xpose.msra.mxu0 0.0
        %1098 = vmatpush.xpose.msra.mxu0 0.0
        %1099 = vmatpush.xpose.msra.mxu0 0.0
        %1100 = vmatpush.xpose.msra.mxu0 0.0
        %1101 = vmatpush.xpose.msra.mxu0 0.0
        %1102 = vmatpush.xpose.msra.mxu0 0.0
        %1103 = vmatpush.xpose.msra.mxu0 0.0
        %1104 = vmatpush.xpose.msra.mxu0 0.0
        %1105 = vmatpush.xpose.msra.mxu0 0.0
        %1106 = vmatpush.xpose.msra.mxu0 0.0
        %1107 = vmatpush.xpose.msra.mxu0 %v1091
        %1108 = vmatpush.xpose.msra.mxu0 %v1089
        %1109 = vmatmul.f32.gmra.mxu0 %v1085
        %v1110 = vpop.f32.mrf.mxu0
        %v1111 = vadd.f32 0.0, %v1110
        %1112 = vmatmul.f32.gmra.mxu0 %v1087
        %v1113 = vpop.f32.mrf.mxu0
        %v1114 = vadd.f32 0.0, %v1113
        %1115 = vdwg.mxu0
        %v1116 = vmul.f32 %v1072, 0.35355338
        %v1117 = vmul.f32 %v1075, 0.35355338
        %v1118 = vmul.f32 %v1111, 0.35355338
        %v1119 = vmul.f32 %v1114, 0.35355338
        %v1120 = vadd.f32 %v1116, %v837
        %v1121 = vadd.f32 %v1117, %v838
        %v1122 = vadd.f32 %v1118, %v837
        %v1123 = vadd.f32 %v1119, %v838
        %v1124 = vsel %vm922, %v1120, -inf
        %1125 = vmax.xlane.f32.xlu0 %v1124
        %v1126 = vpop.xlane.xlu0 %1125
        %v1127 = vsel %vm922, %v1121, -inf
        %1128 = vmax.xlane.f32.xlu0 %v1127
        %v1129 = vpop.xlane.xlu0 %1128
        %v1130 = vsel %vm922, %v1122, -inf
        %1131 = vmax.xlane.f32.xlu0 %v1130
        %v1132 = vpop.xlane.xlu0 %1131
        %v1133 = vsel %vm922, %v1123, -inf
        %1134 = vmax.xlane.f32.xlu0 %v1133
        %v1135 = vpop.xlane.xlu0 %1134
        %v1136 = vsub.f32 %v1120, %v1126
        %v1137 = vsub.f32 %v1121, %v1129
        %v1138 = vsub.f32 %v1122, %v1132
        %v1139 = vsub.f32 %v1123, %v1135
        %v1140 = vmul.f32 %v1136, 1.442695
        %v1141 = vpow.pop %v1140
        %v1142 = vmul.f32 %v1137, 1.442695
        %v1143 = vpow.pop %v1142
        %v1144 = vmul.f32 %v1138, 1.442695
        %v1145 = vpow.pop %v1144
        %v1146 = vmul.f32 %v1139, 1.442695
        %v1147 = vpow.pop %v1146
        %v1148 = vsel %vm922, %v1141, 0.0
        %1149 = vadd.xlane.f32.xlu0 %v1148
        %v1150 = vpop.xlane.xlu0 %1149
        %v1151 = vsel %vm922, %v1143, 0.0
        %1152 = vadd.xlane.f32.xlu0 %v1151
        %v1153 = vpop.xlane.xlu0 %1152
        %v1154 = vsel %vm922, %v1145, 0.0
        %1155 = vadd.xlane.f32.xlu0 %v1154
        %v1156 = vpop.xlane.xlu0 %1155
        %v1157 = vsel %vm922, %v1147, 0.0
        %1158 = vadd.xlane.f32.xlu0 %v1157
        %v1159 = vpop.xlane.xlu0 %1158
        %v1160 = vrcp.pop %v1150
        %v1161 = vrcp.pop %v1153
        %v1162 = vrcp.pop %v1156
        %v1163 = vrcp.pop %v1159
        %v1164 = vmul.f32 %v1141, %v1160
        %v1165 = vmul.f32 %v1143, %v1161
        %v1166 = vmul.f32 %v1145, %v1162
        %v1167 = vmul.f32 %v1147, %v1163
        %1168 = vrot.lane.b32.xlu0 %v826, 88
        %v1169 = vpop.permute.xlu0 %1168
        %1170 = vrot.lane.b32.xlu0 %v829, 88
        %v1171 = vpop.permute.xlu0 %1170
        %v1175 = vsel %vm922, %v1164, 0
        %v1178 = vsel %vm922, %v1165, 0
        %1180 = vmatpush.msra.mxu0 0.0
        %1181 = vmatpush.msra.mxu0 0.0
        %1182 = vmatpush.msra.mxu0 0.0
        %1183 = vmatpush.msra.mxu0 0.0
        %1184 = vmatpush.msra.mxu0 0.0
        %1185 = vmatpush.msra.mxu0 0.0
        %1186 = vmatpush.msra.mxu0 0.0
        %1187 = vmatpush.msra.mxu0 0.0
        %1188 = vmatpush.msra.mxu0 0.0
        %1189 = vmatpush.msra.mxu0 0.0
        %1190 = vmatpush.msra.mxu0 0.0
        %1191 = vmatpush.msra.mxu0 0.0
        %1192 = vmatpush.msra.mxu0 0.0
        %1193 = vmatpush.msra.mxu0 0.0
        %1194 = vmatpush.msra.mxu0 %v1171
        %1195 = vmatpush.msra.mxu0 %v1169
        %1196 = vmatmul.f32.gmra.mxu0 %v1175
        %v1197 = vpop.f32.mrf.mxu0
        %v1198 = vadd.f32 0.0, %v1197
        %1199 = vmatmul.f32.gmra.mxu0 %v1178
        %v1200 = vpop.f32.mrf.mxu0
        %v1201 = vadd.f32 0.0, %v1200
        %1202 = vdwg.mxu0
        %1203 = vrot.lane.b32.xlu0 %v832, 88
        %v1204 = vpop.permute.xlu0 %1203
        %1205 = vrot.lane.b32.xlu0 %v835, 88
        %v1206 = vpop.permute.xlu0 %1205
        %v1210 = vsel %vm922, %v1166, 0
        %v1213 = vsel %vm922, %v1167, 0
        %1215 = vmatpush.msra.mxu0 0.0
        %1216 = vmatpush.msra.mxu0 0.0
        %1217 = vmatpush.msra.mxu0 0.0
        %1218 = vmatpush.msra.mxu0 0.0
        %1219 = vmatpush.msra.mxu0 0.0
        %1220 = vmatpush.msra.mxu0 0.0
        %1221 = vmatpush.msra.mxu0 0.0
        %1222 = vmatpush.msra.mxu0 0.0
        %1223 = vmatpush.msra.mxu0 0.0
        %1224 = vmatpush.msra.mxu0 0.0
        %1225 = vmatpush.msra.mxu0 0.0
        %1226 = vmatpush.msra.mxu0 0.0
        %1227 = vmatpush.msra.mxu0 0.0
        %1228 = vmatpush.msra.mxu0 0.0
        %1229 = vmatpush.msra.mxu0 %v1206
        %1230 = vmatpush.msra.mxu0 %v1204
        %1231 = vmatmul.f32.gmra.mxu0 %v1210
        %v1232 = vpop.f32.mrf.mxu0
        %v1233 = vadd.f32 0.0, %v1232
        %1234 = vmatmul.f32.gmra.mxu0 %v1213
        %v1235 = vpop.f32.mrf.mxu0
        %v1236 = vadd.f32 0.0, %v1235
        %1237 = vdwg.mxu0
        %s1238 = scalar_lea.vmem %s627, 8
        %v1239 = vld [vmem:[%s1238] sm:$0xff]
        %v1241 = vsel %vm845, %v1198, 0
        %v1244 = vsel %vm845, %v1201, 0
        %v1247 = vsel %vm845, %v1233, 0
        %v1250 = vsel %vm845, %v1236, 0
        %1252 = vmatpush.msra.mxu0 0.0
        %1253 = vmatpush.msra.mxu0 0.0
        %1254 = vmatpush.msra.mxu0 0.0
        %1255 = vmatpush.msra.mxu0 0.0
        %1256 = vmatpush.msra.mxu0 0.0
        %1257 = vmatpush.msra.mxu0 0.0
        %1258 = vmatpush.msra.mxu0 0.0
        %1259 = vmatpush.msra.mxu0 0.0
        %1260 = vmatpush.msra.mxu0 0.0
        %1261 = vmatpush.msra.mxu0 0.0
        %1262 = vmatpush.msra.mxu0 0.0
        %1263 = vmatpush.msra.mxu0 0.0
        %1264 = vmatpush.msra.mxu0 0.0
        %1265 = vmatpush.msra.mxu0 0.0
        %1266 = vmatpush.msra.mxu0 0.0
        %1267 = vmatpush.msra.mxu0 %v1239
        %1268 = vmatmul.f32.gmra.mxu0 %v1241
        %v1269 = vpop.f32.mrf.mxu0
        %v1270 = vadd.f32 0.0, %v1269
        %1271 = vmatmul.f32.gmra.mxu0 %v1244
        %v1272 = vpop.f32.mrf.mxu0
        %v1273 = vadd.f32 0.0, %v1272
        %1274 = vmatmul.f32.gmra.mxu0 %v1247
        %v1275 = vpop.f32.mrf.mxu0
        %v1276 = vadd.f32 0.0, %v1275
        %1277 = vmatmul.f32.gmra.mxu0 %v1250
        %v1278 = vpop.f32.mrf.mxu0
        %v1279 = vadd.f32 0.0, %v1278
        %1280 = vdwg.mxu0
        %v1282 = vsel %vm845, %v997, 0
        %v1285 = vsel %vm845, %v1000, 0
        %v1288 = vsel %vm845, %v1032, 0
        %v1291 = vsel %vm845, %v1035, 0
        %1293 = vmatpush.msra.mxu0 0.0
        %1294 = vmatpush.msra.mxu0 0.0
        %1295 = vmatpush.msra.mxu0 0.0
        %1296 = vmatpush.msra.mxu0 0.0
        %1297 = vmatpush.msra.mxu0 0.0
        %1298 = vmatpush.msra.mxu0 0.0
        %1299 = vmatpush.msra.mxu0 0.0
        %1300 = vmatpush.msra.mxu0 0.0
        %1301 = vmatpush.msra.mxu0 0.0
        %1302 = vmatpush.msra.mxu0 0.0
        %1303 = vmatpush.msra.mxu0 0.0
        %1304 = vmatpush.msra.mxu0 0.0
        %1305 = vmatpush.msra.mxu0 0.0
        %1306 = vmatpush.msra.mxu0 0.0
        %1307 = vmatpush.msra.mxu0 0.0
        %1308 = vmatpush.msra.mxu0 %v1037
        %1309 = vmatmul.f32.gmra.mxu0 %v1282
        %v1310 = vpop.f32.mrf.mxu0
        %v1311 = vadd.f32 %v1270, %v1310
        %1312 = vmatmul.f32.gmra.mxu0 %v1285
        %v1313 = vpop.f32.mrf.mxu0
        %v1314 = vadd.f32 %v1273, %v1313
        %1315 = vmatmul.f32.gmra.mxu0 %v1288
        %v1316 = vpop.f32.mrf.mxu0
        %v1317 = vadd.f32 %v1276, %v1316
        %1318 = vmatmul.f32.gmra.mxu0 %v1291
        %v1319 = vpop.f32.mrf.mxu0
        %v1320 = vadd.f32 %v1279, %v1319
        %1321 = vdwg.mxu0
        %v1322 = vld [vmem:[%s630] sm:$0x1]
        %v1324 = vperm.slane %v1322, 0
        %v1326 = vadd.f32 %v1311, %v1324
        %v1327 = vadd.f32 %v1314, %v1324
        %v1328 = vadd.f32 %v1317, %v1324
        %v1329 = vadd.f32 %v1320, %v1324
        %v1330 = vadd.f32 %v672, %v1326
        %v1331 = vadd.f32 %v673, %v1327
        %v1332 = vadd.f32 %v674, %v1328
        %v1333 = vadd.f32 %v675, %v1329
        %v1334 = vsel %vm676, %v1330, 0.0
        %1335 = vadd.xlane.f32.xlu0 %v1334
        %v1336 = vpop.xlane.xlu0 %1335
        %v1337 = vsel %vm676, %v1331, 0.0
        %1338 = vadd.xlane.f32.xlu0 %v1337
        %v1339 = vpop.xlane.xlu0 %1338
        %v1340 = vsel %vm676, %v1332, 0.0
        %1341 = vadd.xlane.f32.xlu0 %v1340
        %v1342 = vpop.xlane.xlu0 %1341
        %v1343 = vsel %vm676, %v1333, 0.0
        %1344 = vadd.xlane.f32.xlu0 %v1343
        %v1345 = vpop.xlane.xlu0 %1344
        %v1346 = vmul.f32 %v1336, %v695
        %v1347 = vmul.f32 %v1339, %v695
        %v1348 = vmul.f32 %v1342, %v695
        %v1349 = vmul.f32 %v1345, %v695
        %v1350 = vsub.f32 %v1330, %v1346
        %v1351 = vsub.f32 %v1331, %v1347
        %v1352 = vsub.f32 %v1332, %v1348
        %v1353 = vsub.f32 %v1333, %v1349
        %v1354 = vmul.f32 %v1350, %v1350
        %v1355 = vmul.f32 %v1351, %v1351
        %v1356 = vmul.f32 %v1352, %v1352
        %v1357 = vmul.f32 %v1353, %v1353
        %v1358 = vsel %vm676, %v1354, 0.0
        %1359 = vadd.xlane.f32.xlu0 %v1358
        %v1360 = vpop.xlane.xlu0 %1359
        %v1361 = vsel %vm676, %v1355, 0.0
        %1362 = vadd.xlane.f32.xlu0 %v1361
        %v1363 = vpop.xlane.xlu0 %1362
        %v1364 = vsel %vm676, %v1356, 0.0
        %1365 = vadd.xlane.f32.xlu0 %v1364
        %v1366 = vpop.xlane.xlu0 %1365
        %v1367 = vsel %vm676, %v1357, 0.0
        %1368 = vadd.xlane.f32.xlu0 %v1367
        %v1369 = vpop.xlane.xlu0 %1368
        %v1370 = vmul.f32 %v1360, %v695
        %v1371 = vmul.f32 %v1363, %v695
        %v1372 = vmul.f32 %v1366, %v695
        %v1373 = vmul.f32 %v1369, %v695
        %v1374 = vadd.f32 %v1370, 1e-05
        %v1375 = vadd.f32 %v1371, 1e-05
        %v1376 = vadd.f32 %v1372, 1e-05
        %v1377 = vadd.f32 %v1373, 1e-05
        %v1378 = vrsqrt.pop %v1374
        %v1379 = vmul.f32 %v1378, %v1374
        %v1380 = vmul.f32 %v1379, %v1378
        %v1381 = vmul.f32 0.5, %v1380
        %v1382 = vsub.f32 1.5, %v1381
        %v1383 = vmul.f32 %v1378, %v1382
        %vm1384 = vweird.f32 %v1374
        %vm1385 = vweird.f32 %v1378
        %vm1386 = vmor %vm1384, %vm1385
        %v1387 = vsel %vm1386, %v1378, %v1383
        %v1388 = vrsqrt.pop %v1375
        %v1389 = vmul.f32 %v1388, %v1375
        %v1390 = vmul.f32 %v1389, %v1388
        %v1391 = vmul.f32 0.5, %v1390
        %v1392 = vsub.f32 1.5, %v1391
        %v1393 = vmul.f32 %v1388, %v1392
        %vm1394 = vweird.f32 %v1375
        %vm1395 = vweird.f32 %v1388
        %vm1396 = vmor %vm1394, %vm1395
        %v1397 = vsel %vm1396, %v1388, %v1393
        %v1398 = vrsqrt.pop %v1376
        %v1399 = vmul.f32 %v1398, %v1376
        %v1400 = vmul.f32 %v1399, %v1398
        %v1401 = vmul.f32 0.5, %v1400
        %v1402 = vsub.f32 1.5, %v1401
        %v1403 = vmul.f32 %v1398, %v1402
        %vm1404 = vweird.f32 %v1376
        %vm1405 = vweird.f32 %v1398
        %vm1406 = vmor %vm1404, %vm1405
        %v1407 = vsel %vm1406, %v1398, %v1403
        %v1408 = vrsqrt.pop %v1377
        %v1409 = vmul.f32 %v1408, %v1377
        %v1410 = vmul.f32 %v1409, %v1408
        %v1411 = vmul.f32 0.5, %v1410
        %v1412 = vsub.f32 1.5, %v1411
        %v1413 = vmul.f32 %v1408, %v1412
        %vm1414 = vweird.f32 %v1377
        %vm1415 = vweird.f32 %v1408
        %vm1416 = vmor %vm1414, %vm1415
        %v1417 = vsel %vm1416, %v1408, %v1413
        %v1418 = vmul.f32 %v1350, %v1387
        %v1419 = vmul.f32 %v1351, %v1397
        %v1420 = vmul.f32 %v1352, %v1407
        %v1421 = vmul.f32 %v1353, %v1417
        %v1422 = vld [vmem:[%s633] sm:$0x1]
        %v1424 = vperm.slane %v1422, 0
        %v1426 = vmul.f32 %v1418, %v1424
        %v1427 = vmul.f32 %v1419, %v1424
        %v1428 = vmul.f32 %v1420, %v1424
        %v1429 = vmul.f32 %v1421, %v1424
        %v1430 = vld [vmem:[%s636] sm:$0x1]
        %v1432 = vperm.slane %v1430, 0
        %v1434 = vadd.f32 %v1426, %v1432
        %v1435 = vadd.f32 %v1427, %v1432
        %v1436 = vadd.f32 %v1428, %v1432
        %v1437 = vadd.f32 %v1429, %v1432
        %v1438 = vld [vmem:[%s641] sm:$0xff]
        %v1439 = vld [vmem:[%s641 + $0x8] sm:$0xff]
        %v1440 = vld [vmem:[%s641 + $0x10] sm:$0xff]
        %v1441 = vld [vmem:[%s641 + $0x18] sm:$0xff]
        %v1442 = vld [vmem:[%s644] sm:$0x1]
        %v1444 = vperm.slane %v1442, 0
        %v1447 = vsel %vm676, %v1434, 0
        %v1450 = vsel %vm676, %v1435, 0
        %v1453 = vsel %vm676, %v1436, 0
        %v1456 = vsel %vm676, %v1437, 0
        %1458 = vmatpush.msra.mxu0 0.0
        %1459 = vmatpush.msra.mxu0 0.0
        %1460 = vmatpush.msra.mxu0 0.0
        %1461 = vmatpush.msra.mxu0 0.0
        %1462 = vmatpush.msra.mxu0 0.0
        %1463 = vmatpush.msra.mxu0 0.0
        %1464 = vmatpush.msra.mxu0 0.0
        %1465 = vmatpush.msra.mxu0 0.0
        %1466 = vmatpush.msra.mxu0 0.0
        %1467 = vmatpush.msra.mxu0 0.0
        %1468 = vmatpush.msra.mxu0 0.0
        %1469 = vmatpush.msra.mxu0 0.0
        %1470 = vmatpush.msra.mxu0 %v1441
        %1471 = vmatpush.msra.mxu0 %v1440
        %1472 = vmatpush.msra.mxu0 %v1439
        %1473 = vmatpush.msra.mxu0 %v1438
        %1474 = vmatmul.f32.gmra.mxu0 %v1447
        %v1475 = vpop.f32.mrf.mxu0
        %v1476 = vadd.f32 %v1444, %v1475
        %1477 = vmatmul.f32.gmra.mxu0 %v1450
        %v1478 = vpop.f32.mrf.mxu0
        %v1479 = vadd.f32 %v1444, %v1478
        %1480 = vmatmul.f32.gmra.mxu0 %v1453
        %v1481 = vpop.f32.mrf.mxu0
        %v1482 = vadd.f32 %v1444, %v1481
        %1483 = vmatmul.f32.gmra.mxu0 %v1456
        %v1484 = vpop.f32.mrf.mxu0
        %v1485 = vadd.f32 %v1444, %v1484
        %1486 = vdwg.mxu0
        %v1487 = vmax.f32 %v1476, 0.0
        %v1488 = vmax.f32 %v1479, 0.0
        %v1489 = vmax.f32 %v1482, 0.0
        %v1490 = vmax.f32 %v1485, 0.0
        %v1491 = vld [vmem:[%s649] sm:$0xff]
        %v1492 = vld [vmem:[%s649 + $0x8] sm:$0xff]
        %v1493 = vld [vmem:[%s649 + $0x10] sm:$0xff]
        %v1494 = vld [vmem:[%s649 + $0x18] sm:$0xff]
        %v1495 = vld [vmem:[%s649 + $0x20] sm:$0xff]
        %v1496 = vld [vmem:[%s649 + $0x28] sm:$0xff]
        %v1497 = vld [vmem:[%s649 + $0x30] sm:$0xff]
        %v1498 = vld [vmem:[%s649 + $0x38] sm:$0xff]
        %v1499 = vld [vmem:[%s649 + $0x40] sm:$0xff]
        %v1500 = vld [vmem:[%s649 + $0x48] sm:$0xff]
        %v1501 = vld [vmem:[%s649 + $0x50] sm:$0xff]
        %v1502 = vld [vmem:[%s649 + $0x58] sm:$0xff]
        %v1503 = vld [vmem:[%s649 + $0x60] sm:$0xff]
        %v1504 = vld [vmem:[%s649 + $0x68] sm:$0xff]
        %v1505 = vld [vmem:[%s649 + $0x70] sm:$0xff]
        %v1506 = vld [vmem:[%s649 + $0x78] sm:$0xff]
        %v1507 = vld [vmem:[%s652] sm:$0x1]
        %v1509 = vperm.slane %v1507, 0
        %1511 = vmatpush.msra.mxu0 %v1506
        %1512 = vmatpush.msra.mxu0 %v1505
        %1513 = vmatpush.msra.mxu0 %v1504
        %1514 = vmatpush.msra.mxu0 %v1503
        %1515 = vmatpush.msra.mxu0 %v1502
        %1516 = vmatpush.msra.mxu0 %v1501
        %1517 = vmatpush.msra.mxu0 %v1500
        %1518 = vmatpush.msra.mxu0 %v1499
        %1519 = vmatpush.msra.mxu0 %v1498
        %1520 = vmatpush.msra.mxu0 %v1497
        %1521 = vmatpush.msra.mxu0 %v1496
        %1522 = vmatpush.msra.mxu0 %v1495
        %1523 = vmatpush.msra.mxu0 %v1494
        %1524 = vmatpush.msra.mxu0 %v1493
        %1525 = vmatpush.msra.mxu0 %v1492
        %1526 = vmatpush.msra.mxu0 %v1491
        %1527 = vmatmul.f32.gmra.mxu0 %v1487
        %v1528 = vpop.f32.mrf.mxu0
        %v1529 = vadd.f32 %v1509, %v1528
        %1530 = vmatmul.f32.gmra.mxu0 %v1488
        %v1531 = vpop.f32.mrf.mxu0
        %v1532 = vadd.f32 %v1509, %v1531
        %1533 = vmatmul.f32.gmra.mxu0 %v1489
        %v1534 = vpop.f32.mrf.mxu0
        %v1535 = vadd.f32 %v1509, %v1534
        %1536 = vmatmul.f32.gmra.mxu0 %v1490
        %v1537 = vpop.f32.mrf.mxu0
        %v1538 = vadd.f32 %v1509, %v1537
        %1539 = vdwg.mxu0
        %v1540 = vadd.f32 %v1330, %v1529
        %v1541 = vadd.f32 %v1331, %v1532
        %v1542 = vadd.f32 %v1332, %v1535
        %v1543 = vadd.f32 %v1333, %v1538
        %1544 = vst.msk [vmem:[#allocation2] sm:$0xff] %vm676, %v1540
        %1545 = vst.msk [vmem:[#allocation2 + $0x8] sm:$0xff] %vm676, %v1541
        %1546 = vst.msk [vmem:[#allocation2 + $0x10] sm:$0xff] %vm676, %v1542
        %1547 = vst.msk [vmem:[#allocation2 + $0x18] sm:$0xff] %vm676, %v1543
        %p1548 = scmp.eq.s32.totalorder %s27, 1
        // Predicated region
        $region85: #{tpu_custom_call.1} parent=79 // pred_check
          %p1549 = pneg %p1548
        $region86: #{tpu_custom_call.1} parent=79 // pred_check_branch
          %1551 = sbr.rel (%p1549) target = $region88
        $region87: #{tpu_custom_call.1} parent=79 // pred_region
          %1552 = vst.msk [vmem:[#allocation3] sm:$0xff] %vm676, %v1540
          %1553 = vst.msk [vmem:[#allocation3 + $0x8] sm:$0xff] %vm676, %v1541
          %1554 = vst.msk [vmem:[#allocation3 + $0x10] sm:$0xff] %vm676, %v1542
          %1555 = vst.msk [vmem:[#allocation3 + $0x18] sm:$0xff] %vm676, %v1543
        $region88: #{tpu_custom_call.1} parent=79 // pred_fallthru
          _
        // Predicated region
        $region89: #{tpu_custom_call.1} parent=79 // pred_check
          %p1556 = pneg %p415
        $region90: #{tpu_custom_call.1} parent=79 // pred_check_branch
          %1558 = sbr.rel (%p1556) target = $region92
        $region91: #{tpu_custom_call.1} parent=79 // pred_region
          %1560 = vsyncadd [#allocation4], 0
          %s1561 = sshll.u32 [#allocation3], 4
          %s1562 = int_to_ptr.vmem [resolvable:$true] %s1561
          %s1563 = sshll.u32 %s15, 4
          %s1564 = int_to_ptr.hbm [resolvable:$true] %s1563
          %1569 = dma.vmem_to_hbm [thread:$0]  %s1562, 512, %s1564, [#allocation4], 128, 128, 8
        $region92: #{tpu_custom_call.1} parent=79 // pred_fallthru
          _
        // Predicated region
        $region93: #{tpu_custom_call.1} parent=79 // pred_check
          %p1570 = pneg %p415
        $region94: #{tpu_custom_call.1} parent=79 // pred_check_branch
          %1572 = sbr.rel (%p1570) target = $region96
        $region95: #{tpu_custom_call.1} parent=79 // pred_region
          %1574 = dma.done [#allocation4], 512
        $region96: #{tpu_custom_call.1} parent=79 // pred_fallthru
          _
      $region80: #{tpu_custom_call.1} parent=5 // pred_fallthru
        _
      %p1575 = scmp.le.s32.totalorder 2, %s22
      // Predicated region
      $region97: #{tpu_custom_call.1} parent=5 // pred_check
        %p1576 = pneg %p1575
      $region98: #{tpu_custom_call.1} parent=5 // pred_check_branch
        %1578 = sbr.rel (%p1576) target = $region100
      $region99: #{tpu_custom_call.1} parent=5 // pred_region
        %s1579 = ssub.s32 %s22, 2
      $region100: #{tpu_custom_call.1} parent=5 // pred_fallthru
        _
    $region6: #{tpu_custom_call.1} parent=1 // loop_footer
      %s26 = sadd.s32 1, %s22
    $region7: #{tpu_custom_call.1} parent=1 // loop_footer_branch
      %21 = sbr.rel target = $region3
    $region8: #{tpu_custom_call.1} parent=1 // loop_exit
      _
    %1580 = vsyncpa [#allocation4], 1
    %s1581 = scalar_lea.sflag [#allocation4], 1
    %1582 = vsyncpa %s1581, 1

</llo_original>
